<compile_context>
chip_gen: v7x
topology: tpu7x:2x2x1
jax: 0.10.0
libtpu: 0.0.40
codegen_flags: <defaults>
</compile_context>

<pallas_src>
import jax
import jax.numpy as jnp
from jax.experimental import pallas as pl
from jax.experimental.pallas import tpu as pltpu


def _zero_border(ref):
    """Zero only the 1-wide halo border of a (Hpad, Wpad, C) VMEM scratch."""
    hpad, wpad, c = ref.shape
    zrow = jnp.zeros((1, wpad, c), ref.dtype)
    ref[0:1, :, :] = zrow
    ref[hpad - 1:hpad, :, :] = zrow
    zcol = jnp.zeros((hpad, 1, c), ref.dtype)
    ref[:, 0:1, :] = zcol
    ref[:, wpad - 1:wpad, :] = zcol


def _encoder_kernel(x_ref, w1_ref, b1_ref, w2_ref, b2_ref, o_ref,
                    pad1_ref, pad2_ref):
    # x_ref : (1, H, Wp, 2, Cin) f32   -- W pre-split into (Wp, 2) by wrapper
    # w*_ref: (9*C, Cout)        bf16  -- BN scale folded into the weights
    # b*_ref: (1, Cout)          f32   -- conv bias + BN shift, folded
    # o_ref : (1, Hp, Wp*Cout)   f32   -- lane-dense output view
    _, H, Wp, _, Cin = x_ref.shape
    Hp = H // 2
    Cout = b1_ref.shape[-1]

    # Border-only zero of the padded scratch (interior is overwritten below).
    _zero_border(pad1_ref)
    _zero_border(pad2_ref)

    # ---- 2x2 max pool, stride 2 (no lane/sublane relayout needed) ---------
    x4 = x_ref[0]                                            # (H, Wp, 2, Cin)
    xw = jnp.maximum(x4[:, :, 0, :], x4[:, :, 1, :])         # (H, Wp, Cin)
    x5 = xw.reshape(Hp, 2, Wp, Cin)                          # split leading dim only
    pooled = jnp.maximum(x5[:, 0, :, :], x5[:, 1, :, :])     # (Hp, Wp, Cin)
    pad1_ref[1:Hp + 1, 1:Wp + 1, :] = pooled

    def conv3x3_bias_relu(pad_ref, w_ref, b_ref, cin):
        # Full im2col: 3 un-shifted row loads (dy is along the slowest axis,
        # so no sublane relayout), 9 value-level W slices, one lane-axis
        # concat, then a single fat K = 9*cin bf16 matmul (f32 accumulate).
        taps = []
        for dy in range(3):
            rows = pad_ref[dy:dy + Hp, :, :]                 # (Hp, Wp+2, cin)
            for dx in range(3):
                taps.append(rows[:, dx:dx + Wp, :])          # (Hp, Wp, cin)
        patches = jnp.concatenate(taps, axis=-1)             # (Hp, Wp, 9*cin)
        patches = patches.reshape(Hp * Wp, 9 * cin).astype(jnp.bfloat16)
        acc = jnp.dot(patches, w_ref[...],
                      preferred_element_type=jnp.float32)    # (Hp*Wp, Cout) f32
        # BN scale already folded into w; bias + ReLU fused here (no separate
        # scale pass, no zero-initialised accumulator).
        return jnp.maximum(acc + b_ref[...], 0.0)

    y1 = conv3x3_bias_relu(pad1_ref, w1_ref, b1_ref, Cin)    # (Hp*Wp, Cout)
    pad2_ref[1:Hp + 1, 1:Wp + 1, :] = y1.reshape(Hp, Wp, Cout)
    y2 = conv3x3_bias_relu(pad2_ref, w2_ref, b2_ref, Cout)   # (Hp*Wp, Cout)

    # Lane-dense store: pack (Hp, Wp, Cout) -> (Hp, Wp*Cout) so the store's
    # minor (lane) dim is Wp*Cout instead of Cout.
    y2_3d = y2.reshape(Hp, Wp, Cout)
    o_ref[0] = jnp.concatenate([y2_3d[:, w, :] for w in range(Wp)], axis=-1)


def _fold_bn_into_weights(w1, s1, b1, w2, s2, b2):
    """Fold BN scale into the conv weights (bf16 for the MXU).  The additive
    term (conv bias + BN shift, already combined in init_params) stays f32."""
    cin, cout = w1.shape[2], w1.shape[3]
    w1f = (w1 * s1.reshape(1, 1, 1, -1)).reshape(9 * cin, cout).astype(jnp.bfloat16)
    w2f = (w2 * s2.reshape(1, 1, 1, -1)).reshape(9 * cout, cout).astype(jnp.bfloat16)
    return (w1f, b1.reshape(1, cout).astype(jnp.float32),
            w2f, b2.reshape(1, cout).astype(jnp.float32))


def encoder_block_nhwc(x_nhwc, w1f, b1, w2f, b2):
    """NHWC -> NHWC encoder block: MaxPool2x2 + 2x (Conv3x3 + BN + ReLU)."""
    N, H, W, Cin = x_nhwc.shape
    Hp, Wp = H // 2, W // 2
    Cout = w1f.shape[-1]
    x = x_nhwc.reshape(N, H, Wp, 2, Cin)            # pre-split W for the pool

    out_flat = pl.pallas_call(
        _encoder_kernel,
        out_shape=jax.ShapeDtypeStruct((N, Hp, Wp * Cout), jnp.float32),
        grid_spec=pltpu.PrefetchScalarGridSpec(
            num_scalar_prefetch=0,
            grid=(N,),
            in_specs=[
                pl.BlockSpec((1, H, Wp, 2, Cin), lambda n: (n, 0, 0, 0, 0)),
                pl.BlockSpec((9 * Cin, Cout), lambda n: (0, 0)),
                pl.BlockSpec((1, Cout), lambda n: (0, 0)),
                pl.BlockSpec((9 * Cout, Cout), lambda n: (0, 0)),
                pl.BlockSpec((1, Cout), lambda n: (0, 0)),
            ],
            out_specs=pl.BlockSpec((1, Hp, Wp * Cout), lambda n: (n, 0, 0)),
            scratch_shapes=[
                pltpu.VMEM((Hp + 2, Wp + 2, Cin), jnp.float32),
                pltpu.VMEM((Hp + 2, Wp + 2, Cout), jnp.float32),
            ],
        ),
        compiler_params=pltpu.CompilerParams(
            dimension_semantics=("parallel",),
            vmem_limit_bytes=32 * 1024 * 1024),
    )(x, w1f, b1, w2f, b2)

    return out_flat.reshape(N, Hp, Wp, Cout)        # undo lane-dense view


@jax.jit
def encoder_block_v1_forward(x_nchw, w1, s1, b1, w2, s2, b2):
    """PyTorch-compatible NCHW wrapper: (N,Cin,H,W) -> (N,Cout,H/2,W/2)."""
    w1f, b1f, w2f, b2f = _fold_bn_into_weights(w1, s1, b1, w2, s2, b2)
    x = jnp.transpose(x_nchw, (0, 2, 3, 1))         # NCHW -> NHWC
    y = encoder_block_nhwc(x, w1f, b1f, w2f, b2f)
    return jnp.transpose(y, (0, 3, 1, 2))           # NHWC -> NCHW


def init_params(key, ch_in, ch_out):
    """Deterministic synthetic parameters.  BN folded into (scale, bias)."""
    k0, k1, k2, k3 = jax.random.split(key, 4)
    w1 = jax.random.normal(k0, (3, 3, ch_in, ch_out), jnp.float32) * 0.1   # HWIO
    b1_conv = jax.random.normal(k1, (ch_out,), jnp.float32) * 0.05
    w2 = jax.random.normal(k2, (3, 3, ch_out, ch_out), jnp.float32) * 0.1
    b2_conv = jax.random.normal(k3, (ch_out,), jnp.float32) * 0.05

    def bn_fold(conv_bias, gamma, beta, mean, var, eps=1e-5):
        s = gamma / jnp.sqrt(var + eps)
        return s, (conv_bias - mean) * s + beta

    idx = jnp.arange(ch_out, dtype=jnp.float32)
    s1, b1 = bn_fold(b1_conv, 1.0 + 0.01 * idx, 0.02 * idx,
                     0.01 * idx, 1.0 + 0.05 * idx)
    s2, b2 = bn_fold(b2_conv, 1.0 - 0.01 * idx, -0.02 * idx,
                     -0.01 * idx, 1.0 + 0.03 * idx)
    return (w1, s1.reshape(1, -1), b1.reshape(1, -1),
            w2, s2.reshape(1, -1), b2.reshape(1, -1))


def reference_forward(x_nchw, w1, s1, b1, w2, s2, b2):
    """Pure-JAX f32 reference (same math, XLA conv) for a sanity check."""
    x = jnp.transpose(x_nchw, (0, 2, 3, 1))
    N, H, W, Cin = x.shape
    pooled = jnp.max(x.reshape(N, H // 2, 2, W // 2, 2, Cin), axis=(2, 4))

    def conv_bn_relu(inp, w, s, b):
        y = jax.lax.conv_general_dilated(
            inp, w, window_strides=(1, 1), padding="SAME",
            dimension_numbers=("NHWC", "HWIO", "NHWC"))
        return jnp.maximum(y * s.reshape(1, 1, 1, -1) + b.reshape(1, 1, 1, -1), 0.0)

    y1 = conv_bn_relu(pooled, w1, s1[0], b1[0])
    y2 = conv_bn_relu(y1, w2, s2[0], b2[0])
    return jnp.transpose(y2, (0, 3, 1, 2))


if __name__ == "__main__":
    key = jax.random.PRNGKey(0)
    kx, kp = jax.random.split(key)

    N, CH_IN, CH_OUT, H, W = 2, 4, 8, 16, 16
    x = jax.random.normal(kx, (N, CH_IN, H, W), jnp.float32)
    params = init_params(kp, CH_IN, CH_OUT)

    out = encoder_block_v1_forward(x, *params)
    out = jax.block_until_ready(out)

    ref = jax.block_until_ready(reference_forward(x, *params))
    assert out.shape == (N, CH_OUT, H // 2, W // 2), out.shape
    # bf16-at-the-dot (weights + im2col patches), f32 accumulate: estimated
    # error << 1e-2 at these scales; 2e-2 tolerance as before.
    assert jnp.allclose(out, ref, atol=2e-2, rtol=2e-2), (
        float(jnp.max(jnp.abs(out - ref))))

    print("KERNEL_OK")
</pallas_src>

<mosaic_0001>
module attributes {stable_mosaic.version = 11 : i64} {
  func.func @_encoder_kernel(%arg0: i32, %arg1: memref<1x16x8x2x4xf32, #tpu.memory_space<vmem>>, %arg2: memref<36x8xbf16, #tpu.memory_space<vmem>>, %arg3: memref<1x8xf32, #tpu.memory_space<vmem>>, %arg4: memref<72x8xbf16, #tpu.memory_space<vmem>>, %arg5: memref<1x8xf32, #tpu.memory_space<vmem>>, %arg6: memref<1x8x64xf32, #tpu.memory_space<vmem>>, %arg7: memref<10x10x4xf32, #tpu.memory_space<vmem>>, %arg8: memref<10x10x8xf32, #tpu.memory_space<vmem>>) attributes {dimension_semantics = [#tpu.dimension_semantics<parallel>], iteration_bounds = array<i64: 2>, scalar_prefetch = 0 : i64, scratch_operands = 2 : i64, tpu.core_type = #tpu.core_type<tc>, window_params = [{transform_indices = @transform_0, window_bounds = array<i64: 1, 16, 8, 2, 4>}, {pipeline_mode = #tpu.pipeline_mode<synchronous>, transform_indices = @transform_1, window_bounds = array<i64: 36, 8>}, {pipeline_mode = #tpu.pipeline_mode<synchronous>, transform_indices = @transform_2, window_bounds = array<i64: 1, 8>}, {pipeline_mode = #tpu.pipeline_mode<synchronous>, transform_indices = @transform_3, window_bounds = array<i64: 72, 8>}, {pipeline_mode = #tpu.pipeline_mode<synchronous>, transform_indices = @transform_4, window_bounds = array<i64: 1, 8>}, {transform_indices = @transform_5, window_bounds = array<i64: 1, 8, 64>}]} {
    %cst = arith.constant 0.000000e+00 : f32
    %0 = vector.broadcast %cst : f32 to vector<1x10x4xf32>
    %c0 = arith.constant 0 : index
    %c0_0 = arith.constant 0 : index
    %c0_1 = arith.constant 0 : index
    %1 = vector.load %arg7[%c0, %c0_0, %c0_1] : memref<10x10x4xf32, #tpu.memory_space<vmem>>, vector<1x10x4xf32>
    tpu.vector_store %arg7[%c0, %c0_0, %c0_1], %0 {strides = array<i32>} : memref<10x10x4xf32, #tpu.memory_space<vmem>>, vector<1x10x4xf32>,
    %c9 = arith.constant 9 : index
    %c0_2 = arith.constant 0 : index
    %c0_3 = arith.constant 0 : index
    %2 = vector.load %arg7[%c9, %c0_2, %c0_3] : memref<10x10x4xf32, #tpu.memory_space<vmem>>, vector<1x10x4xf32>
    tpu.vector_store %arg7[%c9, %c0_2, %c0_3], %0 {strides = array<i32>} : memref<10x10x4xf32, #tpu.memory_space<vmem>>, vector<1x10x4xf32>,
    %cst_4 = arith.constant 0.000000e+00 : f32
    %3 = vector.broadcast %cst_4 : f32 to vector<10x1x4xf32>
    %c0_5 = arith.constant 0 : index
    %c0_6 = arith.constant 0 : index
    %c0_7 = arith.constant 0 : index
    %4 = vector.load %arg7[%c0_5, %c0_6, %c0_7] : memref<10x10x4xf32, #tpu.memory_space<vmem>>, vector<10x1x4xf32>
    tpu.vector_store %arg7[%c0_5, %c0_6, %c0_7], %3 {strides = array<i32>} : memref<10x10x4xf32, #tpu.memory_space<vmem>>, vector<10x1x4xf32>,
    %c0_8 = arith.constant 0 : index
    %c9_9 = arith.constant 9 : index
    %c0_10 = arith.constant 0 : index
    %5 = vector.load %arg7[%c0_8, %c9_9, %c0_10] : memref<10x10x4xf32, #tpu.memory_space<vmem>>, vector<10x1x4xf32>
    tpu.vector_store %arg7[%c0_8, %c9_9, %c0_10], %3 {strides = array<i32>} : memref<10x10x4xf32, #tpu.memory_space<vmem>>, vector<10x1x4xf32>,
    %cst_11 = arith.constant 0.000000e+00 : f32
    %6 = vector.broadcast %cst_11 : f32 to vector<1x10x8xf32>
    %c0_12 = arith.constant 0 : index
    %c0_13 = arith.constant 0 : index
    %c0_14 = arith.constant 0 : index
    %7 = vector.load %arg8[%c0_12, %c0_13, %c0_14] : memref<10x10x8xf32, #tpu.memory_space<vmem>>, vector<1x10x8xf32>
    tpu.vector_store %arg8[%c0_12, %c0_13, %c0_14], %6 {strides = array<i32>} : memref<10x10x8xf32, #tpu.memory_space<vmem>>, vector<1x10x8xf32>,
    %c9_15 = arith.constant 9 : index
    %c0_16 = arith.constant 0 : index
    %c0_17 = arith.constant 0 : index
    %8 = vector.load %arg8[%c9_15, %c0_16, %c0_17] : memref<10x10x8xf32, #tpu.memory_space<vmem>>, vector<1x10x8xf32>
    tpu.vector_store %arg8[%c9_15, %c0_16, %c0_17], %6 {strides = array<i32>} : memref<10x10x8xf32, #tpu.memory_space<vmem>>, vector<1x10x8xf32>,
    %cst_18 = arith.constant 0.000000e+00 : f32
    %9 = vector.broadcast %cst_18 : f32 to vector<10x1x8xf32>
    %c0_19 = arith.constant 0 : index
    %c0_20 = arith.constant 0 : index
    %c0_21 = arith.constant 0 : index
    %10 = vector.load %arg8[%c0_19, %c0_20, %c0_21] : memref<10x10x8xf32, #tpu.memory_space<vmem>>, vector<10x1x8xf32>
    tpu.vector_store %arg8[%c0_19, %c0_20, %c0_21], %9 {strides = array<i32>} : memref<10x10x8xf32, #tpu.memory_space<vmem>>, vector<10x1x8xf32>,
    %c0_22 = arith.constant 0 : index
    %c9_23 = arith.constant 9 : index
    %c0_24 = arith.constant 0 : index
    %11 = vector.load %arg8[%c0_22, %c9_23, %c0_24] : memref<10x10x8xf32, #tpu.memory_space<vmem>>, vector<10x1x8xf32>
    tpu.vector_store %arg8[%c0_22, %c9_23, %c0_24], %9 {strides = array<i32>} : memref<10x10x8xf32, #tpu.memory_space<vmem>>, vector<10x1x8xf32>,
    %c0_25 = arith.constant 0 : index
    %c0_26 = arith.constant 0 : index
    %c0_27 = arith.constant 0 : index
    %c0_28 = arith.constant 0 : index
    %c0_29 = arith.constant 0 : index
    %12 = vector.load %arg1[%c0_25, %c0_26, %c0_27, %c0_28, %c0_29] : memref<1x16x8x2x4xf32, #tpu.memory_space<vmem>>, vector<1x16x8x2x4xf32>
    %13 = vector.shape_cast %12 : vector<1x16x8x2x4xf32> to vector<16x8x2x4xf32>
    %14 = vector.extract_strided_slice %13 {offsets = [0, 0, 0, 0], sizes = [16, 8, 1, 4], strides = [1, 1, 1, 1]} : vector<16x8x2x4xf32> to vector<16x8x1x4xf32>
    %15 = vector.shape_cast %14 : vector<16x8x1x4xf32> to vector<16x8x4xf32>
    %16 = vector.extract_strided_slice %13 {offsets = [0, 0, 1, 0], sizes = [16, 8, 1, 4], strides = [1, 1, 1, 1]} : vector<16x8x2x4xf32> to vector<16x8x1x4xf32>
    %17 = vector.shape_cast %16 : vector<16x8x1x4xf32> to vector<16x8x4xf32>
    %18 = arith.maximumf %15, %17 : vector<16x8x4xf32>
    %19 = vector.shape_cast %18 : vector<16x8x4xf32> to vector<8x2x8x4xf32>
    %20 = vector.extract_strided_slice %19 {offsets = [0, 0, 0, 0], sizes = [8, 1, 8, 4], strides = [1, 1, 1, 1]} : vector<8x2x8x4xf32> to vector<8x1x8x4xf32>
    %21 = vector.shape_cast %20 : vector<8x1x8x4xf32> to vector<8x8x4xf32>
    %22 = vector.extract_strided_slice %19 {offsets = [0, 1, 0, 0], sizes = [8, 1, 8, 4], strides = [1, 1, 1, 1]} : vector<8x2x8x4xf32> to vector<8x1x8x4xf32>
    %23 = vector.shape_cast %22 : vector<8x1x8x4xf32> to vector<8x8x4xf32>
    %24 = arith.maximumf %21, %23 : vector<8x8x4xf32>
    %c1 = arith.constant 1 : index
    %c1_30 = arith.constant 1 : index
    %c0_31 = arith.constant 0 : index
    %25 = vector.load %arg7[%c1, %c1_30, %c0_31] : memref<10x10x4xf32, #tpu.memory_space<vmem>>, vector<8x8x4xf32>
    tpu.vector_store %arg7[%c1, %c1_30, %c0_31], %24 {strides = array<i32>} : memref<10x10x4xf32, #tpu.memory_space<vmem>>, vector<8x8x4xf32>,
    %c0_32 = arith.constant 0 : index
    %c0_33 = arith.constant 0 : index
    %c0_34 = arith.constant 0 : index
    %26 = vector.load %arg7[%c0_32, %c0_33, %c0_34] : memref<10x10x4xf32, #tpu.memory_space<vmem>>, vector<8x10x4xf32>
    %27 = vector.extract_strided_slice %26 {offsets = [0, 0, 0], sizes = [8, 8, 4], strides = [1, 1, 1]} : vector<8x10x4xf32> to vector<8x8x4xf32>
    %28 = vector.extract_strided_slice %26 {offsets = [0, 1, 0], sizes = [8, 8, 4], strides = [1, 1, 1]} : vector<8x10x4xf32> to vector<8x8x4xf32>
    %29 = vector.extract_strided_slice %26 {offsets = [0, 2, 0], sizes = [8, 8, 4], strides = [1, 1, 1]} : vector<8x10x4xf32> to vector<8x8x4xf32>
    %c1_35 = arith.constant 1 : index
    %c0_36 = arith.constant 0 : index
    %c0_37 = arith.constant 0 : index
    %30 = vector.load %arg7[%c1_35, %c0_36, %c0_37] : memref<10x10x4xf32, #tpu.memory_space<vmem>>, vector<8x10x4xf32>
    %31 = vector.extract_strided_slice %30 {offsets = [0, 0, 0], sizes = [8, 8, 4], strides = [1, 1, 1]} : vector<8x10x4xf32> to vector<8x8x4xf32>
    %32 = vector.extract_strided_slice %30 {offsets = [0, 1, 0], sizes = [8, 8, 4], strides = [1, 1, 1]} : vector<8x10x4xf32> to vector<8x8x4xf32>
    %33 = vector.extract_strided_slice %30 {offsets = [0, 2, 0], sizes = [8, 8, 4], strides = [1, 1, 1]} : vector<8x10x4xf32> to vector<8x8x4xf32>
    %c2 = arith.constant 2 : index
    %c0_38 = arith.constant 0 : index
    %c0_39 = arith.constant 0 : index
    %34 = vector.load %arg7[%c2, %c0_38, %c0_39] : memref<10x10x4xf32, #tpu.memory_space<vmem>>, vector<8x10x4xf32>
    %35 = vector.extract_strided_slice %34 {offsets = [0, 0, 0], sizes = [8, 8, 4], strides = [1, 1, 1]} : vector<8x10x4xf32> to vector<8x8x4xf32>
    %36 = vector.extract_strided_slice %34 {offsets = [0, 1, 0], sizes = [8, 8, 4], strides = [1, 1, 1]} : vector<8x10x4xf32> to vector<8x8x4xf32>
    %37 = vector.extract_strided_slice %34 {offsets = [0, 2, 0], sizes = [8, 8, 4], strides = [1, 1, 1]} : vector<8x10x4xf32> to vector<8x8x4xf32>
    %38 = tpu.concatenate %27, %28, %29, %31, %32, %33, %35, %36, %37 in 2 : vector<8x8x4xf32>, vector<8x8x4xf32>, vector<8x8x4xf32>, vector<8x8x4xf32>, vector<8x8x4xf32>, vector<8x8x4xf32>, vector<8x8x4xf32>, vector<8x8x4xf32>, vector<8x8x4xf32> -> vector<8x8x36xf32>
    %39 = vector.shape_cast %38 : vector<8x8x36xf32> to vector<64x36xf32>
    %40 = arith.truncf %39 : vector<64x36xf32> to vector<64x36xbf16>
    %c0_40 = arith.constant 0 : index
    %c0_41 = arith.constant 0 : index
    %41 = vector.load %arg2[%c0_40, %c0_41] : memref<36x8xbf16, #tpu.memory_space<vmem>>, vector<36x8xbf16>
    %cst_42 = arith.constant dense<0.000000e+00> : vector<64x8xf32>
    %42 = tpu.matmul %40, %41, %cst_42 {dimension_numbers = #tpu.dot_dimension_numbers<[1], [0], [0], [1], [0, 0, 1, 1], [], []>} : vector<64x36xbf16>, vector<36x8xbf16>, vector<64x8xf32> -> vector<64x8xf32>
    %c0_43 = arith.constant 0 : index
    %c0_44 = arith.constant 0 : index
    %43 = vector.load %arg3[%c0_43, %c0_44] : memref<1x8xf32, #tpu.memory_space<vmem>>, vector<1x8xf32>
    %44 = vector.broadcast %43 : vector<1x8xf32> to vector<64x8xf32>
    %45 = arith.addf %42, %44 : vector<64x8xf32>
    %cst_45 = arith.constant 0.000000e+00 : f32
    %46 = vector.broadcast %cst_45 : f32 to vector<64x8xf32>
    %47 = arith.maximumf %45, %46 : vector<64x8xf32>
    %48 = vector.shape_cast %47 : vector<64x8xf32> to vector<8x8x8xf32>
    %c1_46 = arith.constant 1 : index
    %c1_47 = arith.constant 1 : index
    %c0_48 = arith.constant 0 : index
    %49 = vector.load %arg8[%c1_46, %c1_47, %c0_48] : memref<10x10x8xf32, #tpu.memory_space<vmem>>, vector<8x8x8xf32>
    tpu.vector_store %arg8[%c1_46, %c1_47, %c0_48], %48 {strides = array<i32>} : memref<10x10x8xf32, #tpu.memory_space<vmem>>, vector<8x8x8xf32>,
    %c0_49 = arith.constant 0 : index
    %c0_50 = arith.constant 0 : index
    %c0_51 = arith.constant 0 : index
    %50 = vector.load %arg8[%c0_49, %c0_50, %c0_51] : memref<10x10x8xf32, #tpu.memory_space<vmem>>, vector<8x10x8xf32>
    %51 = vector.extract_strided_slice %50 {offsets = [0, 0, 0], sizes = [8, 8, 8], strides = [1, 1, 1]} : vector<8x10x8xf32> to vector<8x8x8xf32>
    %52 = vector.extract_strided_slice %50 {offsets = [0, 1, 0], sizes = [8, 8, 8], strides = [1, 1, 1]} : vector<8x10x8xf32> to vector<8x8x8xf32>
    %53 = vector.extract_strided_slice %50 {offsets = [0, 2, 0], sizes = [8, 8, 8], strides = [1, 1, 1]} : vector<8x10x8xf32> to vector<8x8x8xf32>
    %c1_52 = arith.constant 1 : index
    %c0_53 = arith.constant 0 : index
    %c0_54 = arith.constant 0 : index
    %54 = vector.load %arg8[%c1_52, %c0_53, %c0_54] : memref<10x10x8xf32, #tpu.memory_space<vmem>>, vector<8x10x8xf32>
    %55 = vector.extract_strided_slice %54 {offsets = [0, 0, 0], sizes = [8, 8, 8], strides = [1, 1, 1]} : vector<8x10x8xf32> to vector<8x8x8xf32>
    %56 = vector.extract_strided_slice %54 {offsets = [0, 1, 0], sizes = [8, 8, 8], strides = [1, 1, 1]} : vector<8x10x8xf32> to vector<8x8x8xf32>
    %57 = vector.extract_strided_slice %54 {offsets = [0, 2, 0], sizes = [8, 8, 8], strides = [1, 1, 1]} : vector<8x10x8xf32> to vector<8x8x8xf32>
    %c2_55 = arith.constant 2 : index
    %c0_56 = arith.constant 0 : index
    %c0_57 = arith.constant 0 : index
    %58 = vector.load %arg8[%c2_55, %c0_56, %c0_57] : memref<10x10x8xf32, #tpu.memory_space<vmem>>, vector<8x10x8xf32>
    %59 = vector.extract_strided_slice %58 {offsets = [0, 0, 0], sizes = [8, 8, 8], strides = [1, 1, 1]} : vector<8x10x8xf32> to vector<8x8x8xf32>
    %60 = vector.extract_strided_slice %58 {offsets = [0, 1, 0], sizes = [8, 8, 8], strides = [1, 1, 1]} : vector<8x10x8xf32> to vector<8x8x8xf32>
    %61 = vector.extract_strided_slice %58 {offsets = [0, 2, 0], sizes = [8, 8, 8], strides = [1, 1, 1]} : vector<8x10x8xf32> to vector<8x8x8xf32>
    %62 = tpu.concatenate %51, %52, %53, %55, %56, %57, %59, %60, %61 in 2 : vector<8x8x8xf32>, vector<8x8x8xf32>, vector<8x8x8xf32>, vector<8x8x8xf32>, vector<8x8x8xf32>, vector<8x8x8xf32>, vector<8x8x8xf32>, vector<8x8x8xf32>, vector<8x8x8xf32> -> vector<8x8x72xf32>
    %63 = vector.shape_cast %62 : vector<8x8x72xf32> to vector<64x72xf32>
    %64 = arith.truncf %63 : vector<64x72xf32> to vector<64x72xbf16>
    %c0_58 = arith.constant 0 : index
    %c0_59 = arith.constant 0 : index
    %65 = vector.load %arg4[%c0_58, %c0_59] : memref<72x8xbf16, #tpu.memory_space<vmem>>, vector<72x8xbf16>
    %cst_60 = arith.constant dense<0.000000e+00> : vector<64x8xf32>
    %66 = tpu.matmul %64, %65, %cst_60 {dimension_numbers = #tpu.dot_dimension_numbers<[1], [0], [0], [1], [0, 0, 1, 1], [], []>} : vector<64x72xbf16>, vector<72x8xbf16>, vector<64x8xf32> -> vector<64x8xf32>
    %c0_61 = arith.constant 0 : index
    %c0_62 = arith.constant 0 : index
    %67 = vector.load %arg5[%c0_61, %c0_62] : memref<1x8xf32, #tpu.memory_space<vmem>>, vector<1x8xf32>
    %68 = vector.broadcast %67 : vector<1x8xf32> to vector<64x8xf32>
    %69 = arith.addf %66, %68 : vector<64x8xf32>
    %cst_63 = arith.constant 0.000000e+00 : f32
    %70 = vector.broadcast %cst_63 : f32 to vector<64x8xf32>
    %71 = arith.maximumf %69, %70 : vector<64x8xf32>
    %72 = vector.shape_cast %71 : vector<64x8xf32> to vector<8x8x8xf32>
    %73 = vector.extract_strided_slice %72 {offsets = [0, 0, 0], sizes = [8, 1, 8], strides = [1, 1, 1]} : vector<8x8x8xf32> to vector<8x1x8xf32>
    %74 = vector.shape_cast %73 : vector<8x1x8xf32> to vector<8x8xf32>
    %75 = vector.extract_strided_slice %72 {offsets = [0, 1, 0], sizes = [8, 1, 8], strides = [1, 1, 1]} : vector<8x8x8xf32> to vector<8x1x8xf32>
    %76 = vector.shape_cast %75 : vector<8x1x8xf32> to vector<8x8xf32>
    %77 = vector.extract_strided_slice %72 {offsets = [0, 2, 0], sizes = [8, 1, 8], strides = [1, 1, 1]} : vector<8x8x8xf32> to vector<8x1x8xf32>
    %78 = vector.shape_cast %77 : vector<8x1x8xf32> to vector<8x8xf32>
    %79 = vector.extract_strided_slice %72 {offsets = [0, 3, 0], sizes = [8, 1, 8], strides = [1, 1, 1]} : vector<8x8x8xf32> to vector<8x1x8xf32>
    %80 = vector.shape_cast %79 : vector<8x1x8xf32> to vector<8x8xf32>
    %81 = vector.extract_strided_slice %72 {offsets = [0, 4, 0], sizes = [8, 1, 8], strides = [1, 1, 1]} : vector<8x8x8xf32> to vector<8x1x8xf32>
    %82 = vector.shape_cast %81 : vector<8x1x8xf32> to vector<8x8xf32>
    %83 = vector.extract_strided_slice %72 {offsets = [0, 5, 0], sizes = [8, 1, 8], strides = [1, 1, 1]} : vector<8x8x8xf32> to vector<8x1x8xf32>
    %84 = vector.shape_cast %83 : vector<8x1x8xf32> to vector<8x8xf32>
    %85 = vector.extract_strided_slice %72 {offsets = [0, 6, 0], sizes = [8, 1, 8], strides = [1, 1, 1]} : vector<8x8x8xf32> to vector<8x1x8xf32>
    %86 = vector.shape_cast %85 : vector<8x1x8xf32> to vector<8x8xf32>
    %87 = vector.extract_strided_slice %72 {offsets = [0, 7, 0], sizes = [8, 1, 8], strides = [1, 1, 1]} : vector<8x8x8xf32> to vector<8x1x8xf32>
    %88 = vector.shape_cast %87 : vector<8x1x8xf32> to vector<8x8xf32>
    %89 = tpu.concatenate %74, %76, %78, %80, %82, %84, %86, %88 in 1 : vector<8x8xf32>, vector<8x8xf32>, vector<8x8xf32>, vector<8x8xf32>, vector<8x8xf32>, vector<8x8xf32>, vector<8x8xf32>, vector<8x8xf32> -> vector<8x64xf32>
    %c0_64 = arith.constant 0 : index
    %c0_65 = arith.constant 0 : index
    %c0_66 = arith.constant 0 : index
    %90 = vector.load %arg6[%c0_64, %c0_65, %c0_66] : memref<1x8x64xf32, #tpu.memory_space<vmem>>, vector<1x8x64xf32>
    %91 = vector.shape_cast %90 : vector<1x8x64xf32> to vector<8x64xf32>
    %92 = vector.shape_cast %89 : vector<8x64xf32> to vector<1x8x64xf32>
    tpu.vector_store %arg6[%c0_64, %c0_65, %c0_66], %92 {strides = array<i32>} : memref<1x8x64xf32, #tpu.memory_space<vmem>>, vector<1x8x64xf32>,
    return
  }
  func.func @transform_0(%arg0: i32) -> (i32, i32, i32, i32, i32) {
    %c0_i32 = arith.constant 0 : i32
    %c0_i32_0 = arith.constant 0 : i32
    %c0_i32_1 = arith.constant 0 : i32
    %c0_i32_2 = arith.constant 0 : i32
    %c0_i32_3 = arith.constant 0 : i32
    return %arg0, %c0_i32, %c0_i32_0, %c0_i32_1, %c0_i32_2 : i32, i32, i32, i32, i32
  }
  func.func @transform_1(%arg0: i32) -> (i32, i32) {
    %c0_i32 = arith.constant 0 : i32
    %c0_i32_0 = arith.constant 0 : i32
    %c0_i32_1 = arith.constant 0 : i32
    return %c0_i32, %c0_i32_0 : i32, i32
  }
  func.func @transform_2(%arg0: i32) -> (i32, i32) {
    %c0_i32 = arith.constant 0 : i32
    %c0_i32_0 = arith.constant 0 : i32
    %c0_i32_1 = arith.constant 0 : i32
    return %c0_i32, %c0_i32_0 : i32, i32
  }
  func.func @transform_3(%arg0: i32) -> (i32, i32) {
    %c0_i32 = arith.constant 0 : i32
    %c0_i32_0 = arith.constant 0 : i32
    %c0_i32_1 = arith.constant 0 : i32
    return %c0_i32, %c0_i32_0 : i32, i32
  }
  func.func @transform_4(%arg0: i32) -> (i32, i32) {
    %c0_i32 = arith.constant 0 : i32
    %c0_i32_0 = arith.constant 0 : i32
    %c0_i32_1 = arith.constant 0 : i32
    return %c0_i32, %c0_i32_0 : i32, i32
  }
  func.func @transform_5(%arg0: i32) -> (i32, i32, i32) {
    %c0_i32 = arith.constant 0 : i32
    %c0_i32_0 = arith.constant 0 : i32
    %c0_i32_1 = arith.constant 0 : i32
    return %arg0, %c0_i32, %c0_i32_0 : i32, i32, i32
  }
}

</mosaic_0001>

<llo_original>
// kernel: encoder_block_v1_forward.1
$region0: #{encoder_block_v1_forward.1}
  #allocation0 [shape = 'u32[]', space=smem, size = 0x4, offset = 0x4, fixed_abs, tag = 'smem constant byte address 0x4 - core index']
  #allocation1 [shape = 'u32[144,128]{1,0:T(1,128)}', space=vmem, size = 0x12000, scoped, tag = 'internal scratch']
  #allocation2 [shape = 'f32[10,10,4]{2,1,0:T(8,128)}', space=vmem, size = 0x14000, scoped, tag = 'scratch operand']
  #allocation3 [shape = 'f32[10,10,8]{2,1,0:T(8,128)}', space=vmem, size = 0x14000, scoped, tag = 'scratch operand']
  %s0 = inlined_call_operand.vmem [shape: f32[2,16,8,2,4], index: 0, kind: input, shape index: {}]
  %s1 = inlined_call_operand.vmem [shape: bf16[36,8], index: 1, kind: input, shape index: {}]
  %s2 = inlined_call_operand.vmem [shape: f32[1,8], index: 2, kind: input, shape index: {}]
  %s3 = inlined_call_operand.vmem [shape: bf16[72,8], index: 3, kind: input, shape index: {}]
  %s4 = inlined_call_operand.vmem [shape: f32[1,8], index: 4, kind: input, shape index: {}]
  %s5 = inlined_call_operand.vmem [shape: f32[2,8,64], index: 5, kind: output, shape index: {}]
  %s6 = sld [smem:[#allocation0]]
  $region53: #{encoder_block_v1_forward.1} parent=0
    _
  %s8 = ssub.s32 1, %s6
  %s9 = scalar_select 0, %s8, %s6
  loop: start=0, step=1, limit=4
  $region2: #{encoder_block_v1_forward.1} parent=0 // loop_pre_header
    _
  $region3: #{encoder_block_v1_forward.1} parent=0 // loop_header
    %s11 = sphi 0, %s15
    %p12 = scmp.ge.s32.totalorder %s11, 4
    %s21 = sphi 0, %s23
    %s24 = sphi 0, %s21
    %s25 = sphi 0, %s24
    %s41 = sphi 0, %s25
    %s45 = sphi 0, %s45
    %s47 = sphi 0, %s45
    %s48 = sphi 0, %s47
    %s62 = sphi 0, %s48
    %s66 = sphi 0, %s66
    %s68 = sphi 0, %s66
    %s69 = sphi 0, %s68
    %s83 = sphi 0, %s69
    %s87 = sphi 0, %s87
    %s89 = sphi 0, %s87
    %s90 = sphi 0, %s89
    %s104 = sphi 0, %s90
    %s108 = sphi 0, %s108
    %s110 = sphi 0, %s108
    %s111 = sphi 0, %s110
    %s125 = sphi 0, %s111
    %s131 = sphi 0, %s133
    %s134 = sphi 0, %s131
    %s135 = sphi 0, %s134
    %s151 = sphi 0, %s135
  $region4: #{encoder_block_v1_forward.1} parent=0 // loop_header_branch
    %14 = sbr.rel (%p12) target = $region8
  $region5: #{encoder_block_v1_forward.1} parent=0 // loop_body
    %s16 = ssub.s32 %s11, 1
    %s17 = ssub.s32 %s11, 2
    %s18 = sadd.s32 %s11, 1
    %s19 = ssub.s32 %s11, %s18
    %p20 = scmp.eq.s32.totalorder %s19, 0
    %s22 = sadd.s32 %s21, 1
    %s23 = scalar_select %p20, %s21, %s22
    %p26 = pneg %p20
    %p27 = scmp.eq.s32.totalorder %s11, 1
    %p28 = por %p26, %p27
    %p29 = scmp.ne.s32.totalorder %s21, %s24
    %p30 = scmp.eq.s32.totalorder %s11, 0
    %p31 = por %p29, %p30
    %p32 = scmp.ne.s32.totalorder %s21, %s24
    %p33 = scmp.eq.s32.totalorder %s16, 1
    %p34 = por %p32, %p33
    %p35 = scmp.ne.s32.totalorder %s24, %s25
    %p36 = scmp.eq.s32.totalorder %s16, 0
    %p37 = por %p35, %p36
    %p38 = scmp.ne.s32.totalorder %s24, %s25
    %p39 = scmp.eq.s32.totalorder %s17, 1
    %p40 = por %p38, %p39
    %p42 = scmp.ne.s32.totalorder %s25, %s41
    %p43 = scmp.eq.s32.totalorder %s17, 0
    %p44 = por %p42, %p43
    %s46 = sadd.s32 %s45, 1
    %p49 = scmp.eq.s32.totalorder %s11, 1
    %p50 = scmp.ne.s32.totalorder %s45, %s47
    %p51 = scmp.eq.s32.totalorder %s11, 0
    %p52 = por %p50, %p51
    %p53 = scmp.ne.s32.totalorder %s45, %s47
    %p54 = scmp.eq.s32.totalorder %s16, 1
    %p55 = por %p53, %p54
    %p56 = scmp.ne.s32.totalorder %s47, %s48
    %p57 = scmp.eq.s32.totalorder %s16, 0
    %p58 = por %p56, %p57
    %p59 = scmp.ne.s32.totalorder %s47, %s48
    %p60 = scmp.eq.s32.totalorder %s17, 1
    %p61 = por %p59, %p60
    %p63 = scmp.ne.s32.totalorder %s48, %s62
    %p64 = scmp.eq.s32.totalorder %s17, 0
    %p65 = por %p63, %p64
    %s67 = sadd.s32 %s66, 1
    %p70 = scmp.eq.s32.totalorder %s11, 1
    %p71 = scmp.ne.s32.totalorder %s66, %s68
    %p72 = scmp.eq.s32.totalorder %s11, 0
    %p73 = por %p71, %p72
    %p74 = scmp.ne.s32.totalorder %s66, %s68
    %p75 = scmp.eq.s32.totalorder %s16, 1
    %p76 = por %p74, %p75
    %p77 = scmp.ne.s32.totalorder %s68, %s69
    %p78 = scmp.eq.s32.totalorder %s16, 0
    %p79 = por %p77, %p78
    %p80 = scmp.ne.s32.totalorder %s68, %s69
    %p81 = scmp.eq.s32.totalorder %s17, 1
    %p82 = por %p80, %p81
    %p84 = scmp.ne.s32.totalorder %s69, %s83
    %p85 = scmp.eq.s32.totalorder %s17, 0
    %p86 = por %p84, %p85
    %s88 = sadd.s32 %s87, 1
    %p91 = scmp.eq.s32.totalorder %s11, 1
    %p92 = scmp.ne.s32.totalorder %s87, %s89
    %p93 = scmp.eq.s32.totalorder %s11, 0
    %p94 = por %p92, %p93
    %p95 = scmp.ne.s32.totalorder %s87, %s89
    %p96 = scmp.eq.s32.totalorder %s16, 1
    %p97 = por %p95, %p96
    %p98 = scmp.ne.s32.totalorder %s89, %s90
    %p99 = scmp.eq.s32.totalorder %s16, 0
    %p100 = por %p98, %p99
    %p101 = scmp.ne.s32.totalorder %s89, %s90
    %p102 = scmp.eq.s32.totalorder %s17, 1
    %p103 = por %p101, %p102
    %p105 = scmp.ne.s32.totalorder %s90, %s104
    %p106 = scmp.eq.s32.totalorder %s17, 0
    %p107 = por %p105, %p106
    %s109 = sadd.s32 %s108, 1
    %p112 = scmp.eq.s32.totalorder %s11, 1
    %p113 = scmp.ne.s32.totalorder %s108, %s110
    %p114 = scmp.eq.s32.totalorder %s11, 0
    %p115 = por %p113, %p114
    %p116 = scmp.ne.s32.totalorder %s108, %s110
    %p117 = scmp.eq.s32.totalorder %s16, 1
    %p118 = por %p116, %p117
    %p119 = scmp.ne.s32.totalorder %s110, %s111
    %p120 = scmp.eq.s32.totalorder %s16, 0
    %p121 = por %p119, %p120
    %p122 = scmp.ne.s32.totalorder %s110, %s111
    %p123 = scmp.eq.s32.totalorder %s17, 1
    %p124 = por %p122, %p123
    %p126 = scmp.ne.s32.totalorder %s111, %s125
    %p127 = scmp.eq.s32.totalorder %s17, 0
    %p128 = por %p126, %p127
    %s129 = ssub.s32 %s11, %s18
    %p130 = scmp.eq.s32.totalorder %s129, 0
    %s132 = sadd.s32 %s131, 1
    %s133 = scalar_select %p130, %s131, %s132
    %p136 = pneg %p130
    %p137 = scmp.eq.s32.totalorder %s11, 1
    %p138 = por %p136, %p137
    %p139 = scmp.ne.s32.totalorder %s131, %s134
    %p140 = scmp.eq.s32.totalorder %s11, 0
    %p141 = por %p139, %p140
    %p142 = scmp.ne.s32.totalorder %s131, %s134
    %p143 = scmp.eq.s32.totalorder %s16, 1
    %p144 = por %p142, %p143
    %p145 = scmp.ne.s32.totalorder %s134, %s135
    %p146 = scmp.eq.s32.totalorder %s16, 0
    %p147 = por %p145, %p146
    %p148 = scmp.ne.s32.totalorder %s134, %s135
    %p149 = scmp.eq.s32.totalorder %s17, 1
    %p150 = por %p148, %p149
    %p152 = scmp.ne.s32.totalorder %s135, %s151
    %p153 = scmp.eq.s32.totalorder %s17, 0
    %p154 = por %p152, %p153
    %p155 = scmp.le.s32.totalorder 1, %s11
    %p156 = scmp.lt.s32.totalorder %s11, 3
    %p157 = pnand %p155, %p156
    %p158 = pneg %p157
    // Predicated region
    $region9: #{encoder_block_v1_forward.1} parent=5 // pred_check
      _
    $region10: #{encoder_block_v1_forward.1} parent=5 // pred_check_branch
      %160 = sbr.rel (%p157) target = $region12
    $region11: #{encoder_block_v1_forward.1} parent=5 // pred_region
      %s161 = ssub.s32 %s11, 1
      // Predicated region
      $region13: #{encoder_block_v1_forward.1} parent=11 // pred_check
        %p162 = pneg %p58
      $region14: #{encoder_block_v1_forward.1} parent=11 // pred_check_branch
        %164 = sbr.rel (%p162) target = $region16
      $region15: #{encoder_block_v1_forward.1} parent=11 // pred_region
        _
      $region16: #{encoder_block_v1_forward.1} parent=11 // pred_fallthru
        _
      // Predicated region
      $region17: #{encoder_block_v1_forward.1} parent=11 // pred_check
        %p165 = pneg %p79
      $region18: #{encoder_block_v1_forward.1} parent=11 // pred_check_branch
        %167 = sbr.rel (%p165) target = $region20
      $region19: #{encoder_block_v1_forward.1} parent=11 // pred_region
        _
      $region20: #{encoder_block_v1_forward.1} parent=11 // pred_fallthru
        _
      // Predicated region
      $region21: #{encoder_block_v1_forward.1} parent=11 // pred_check
        %p168 = pneg %p100
      $region22: #{encoder_block_v1_forward.1} parent=11 // pred_check_branch
        %170 = sbr.rel (%p168) target = $region24
      $region23: #{encoder_block_v1_forward.1} parent=11 // pred_region
        _
      $region24: #{encoder_block_v1_forward.1} parent=11 // pred_fallthru
        _
      // Predicated region
      $region25: #{encoder_block_v1_forward.1} parent=11 // pred_check
        %p171 = pneg %p121
      $region26: #{encoder_block_v1_forward.1} parent=11 // pred_check_branch
        %173 = sbr.rel (%p171) target = $region28
      $region27: #{encoder_block_v1_forward.1} parent=11 // pred_region
        _
      $region28: #{encoder_block_v1_forward.1} parent=11 // pred_fallthru
        _
    $region12: #{encoder_block_v1_forward.1} parent=5 // pred_fallthru
      _
    %p174 = scmp.lt.s32.totalorder %s11, 2
    // Predicated region
    $region29: #{encoder_block_v1_forward.1} parent=5 // pred_check
      %p175 = pneg %p174
    $region30: #{encoder_block_v1_forward.1} parent=5 // pred_check_branch
      %177 = sbr.rel (%p175) target = $region32
    $region31: #{encoder_block_v1_forward.1} parent=5 // pred_region
      // Predicated region
      $region33: #{encoder_block_v1_forward.1} parent=31 // pred_check
        %p178 = pneg %p31
      $region34: #{encoder_block_v1_forward.1} parent=31 // pred_check_branch
        %180 = sbr.rel (%p178) target = $region36
      $region35: #{encoder_block_v1_forward.1} parent=31 // pred_region
        %p181 = scmp.lt.s32.totalorder %s11, 1
        %s182 = scalar_select %p181, %s11, 1
        %s183 = smul.addr %s182, 128
        %s184 = smul.addr %s183, 2
        %s185 = scalar_lea.vmem %s0, %s184
      $region36: #{encoder_block_v1_forward.1} parent=31 // pred_fallthru
        _
    $region32: #{encoder_block_v1_forward.1} parent=5 // pred_fallthru
      _
    %p186 = scmp.le.s32.totalorder 1, %s11
    %p187 = scmp.lt.s32.totalorder %s11, 3
    %p188 = pnand %p186, %p187
    %p189 = pneg %p188
    // Predicated region
    $region37: #{encoder_block_v1_forward.1} parent=5 // pred_check
      _
    $region38: #{encoder_block_v1_forward.1} parent=5 // pred_check_branch
      %191 = sbr.rel (%p188) target = $region40
    $region39: #{encoder_block_v1_forward.1} parent=5 // pred_region
      %s192 = ssub.s32 %s11, 1
      %p193 = scmp.lt.s32.totalorder %s16, 1
      %s194 = scalar_select %p193, %s16, 1
      %s195 = smul.addr %s194, 128
      %s196 = smul.addr %s195, 2
      %s197 = scalar_lea.vmem %s0, %s196
      %p198 = pneg %p37
      %p199 = pneg %p34
      %p200 = pneg %p58
      %p201 = pneg %p55
      %p202 = pneg %p79
      %p203 = pneg %p76
      %p204 = pneg %p100
      %p205 = pneg %p97
      %p206 = pneg %p121
      %p207 = pneg %p118
      %p208 = pneg %p147
      %p209 = pneg %p144
      %p210 = scmp.lt.s32.totalorder %s16, 1
      %s211 = scalar_select %p210, %s16, 1
      %s212 = smul.addr %s211, 8
      %s213 = scalar_lea.vmem %s5, %s212
      %p214 = scmp.lt.s32.totalorder %s16, 1
      %s215 = scalar_select %p214, %s16, 1
      %s216 = smul.addr %s215, 128
      %s217 = smul.addr %s216, 2
      %s218 = scalar_lea.vmem %s0, %s217
      %p219 = scmp.lt.s32.totalorder %s16, 1
      %s220 = scalar_select %p219, %s16, 1
      %s221 = smul.addr %s220, 8
      %s222 = scalar_lea.vmem %s5, %s221
      %vm224 = vcmask 31744
      %225 = vst.msk [vmem:[#allocation2] sm:$0xff] %vm224, 0.0
      %vm226 = vcmask 25600
      %227 = vst.msk [vmem:[#allocation2 + $0x8] sm:$0x3] %vm226, 0.0
      %s228 = scalar_lea.vmem [#allocation2], 144
      %229 = vst.msk [vmem:[%s228] sm:$0xff] %vm224, 0.0
      %230 = vst.msk [vmem:[%s228 + $0x8] sm:$0x3] %vm226, 0.0
      %vm231 = vcmask 24576
      %232 = vst.msk [vmem:[#allocation2] sm:$0x1] %vm231, 0.0
      %233 = vst.msk [vmem:[#allocation2 + $0x10] sm:$0x1] %vm231, 0.0
      %234 = vst.msk [vmem:[#allocation2 + $0x20] sm:$0x1] %vm231, 0.0
      %235 = vst.msk [vmem:[#allocation2 + $0x30] sm:$0x1] %vm231, 0.0
      %236 = vst.msk [vmem:[#allocation2 + $0x40] sm:$0x1] %vm231, 0.0
      %237 = vst.msk [vmem:[#allocation2 + $0x50] sm:$0x1] %vm231, 0.0
      %238 = vst.msk [vmem:[#allocation2 + $0x60] sm:$0x1] %vm231, 0.0
      %239 = vst.msk [vmem:[#allocation2 + $0x70] sm:$0x1] %vm231, 0.0
      %240 = vst.msk [vmem:[#allocation2 + $0x80] sm:$0x1] %vm231, 0.0
      %241 = vst.msk [vmem:[#allocation2 + $0x90] sm:$0x1] %vm231, 0.0
      %242 = vst.msk [vmem:[#allocation2 + $0x9] sm:$0x1] %vm231, 0.0
      %243 = vst.msk [vmem:[#allocation2 + $0x19] sm:$0x1] %vm231, 0.0
      %244 = vst.msk [vmem:[#allocation2 + $0x29] sm:$0x1] %vm231, 0.0
      %245 = vst.msk [vmem:[#allocation2 + $0x39] sm:$0x1] %vm231, 0.0
      %246 = vst.msk [vmem:[#allocation2 + $0x49] sm:$0x1] %vm231, 0.0
      %247 = vst.msk [vmem:[#allocation2 + $0x59] sm:$0x1] %vm231, 0.0
      %248 = vst.msk [vmem:[#allocation2 + $0x69] sm:$0x1] %vm231, 0.0
      %249 = vst.msk [vmem:[#allocation2 + $0x79] sm:$0x1] %vm231, 0.0
      %250 = vst.msk [vmem:[#allocation2 + $0x89] sm:$0x1] %vm231, 0.0
      %251 = vst.msk [vmem:[#allocation2 + $0x99] sm:$0x1] %vm231, 0.0
      %vm252 = vcmask 64512
      %253 = vst.msk [vmem:[#allocation3] sm:$0xff] %vm252, 0.0
      %vm254 = vcmask 58368
      %255 = vst.msk [vmem:[#allocation3 + $0x8] sm:$0x3] %vm254, 0.0
      %s256 = scalar_lea.vmem [#allocation3], 144
      %257 = vst.msk [vmem:[%s256] sm:$0xff] %vm252, 0.0
      %258 = vst.msk [vmem:[%s256 + $0x8] sm:$0x3] %vm254, 0.0
      %vm259 = vcmask 57344
      %260 = vst.msk [vmem:[#allocation3] sm:$0x1] %vm259, 0.0
      %261 = vst.msk [vmem:[#allocation3 + $0x10] sm:$0x1] %vm259, 0.0
      %262 = vst.msk [vmem:[#allocation3 + $0x20] sm:$0x1] %vm259, 0.0
      %263 = vst.msk [vmem:[#allocation3 + $0x30] sm:$0x1] %vm259, 0.0
      %264 = vst.msk [vmem:[#allocation3 + $0x40] sm:$0x1] %vm259, 0.0
      %265 = vst.msk [vmem:[#allocation3 + $0x50] sm:$0x1] %vm259, 0.0
      %266 = vst.msk [vmem:[#allocation3 + $0x60] sm:$0x1] %vm259, 0.0
      %267 = vst.msk [vmem:[#allocation3 + $0x70] sm:$0x1] %vm259, 0.0
      %268 = vst.msk [vmem:[#allocation3 + $0x80] sm:$0x1] %vm259, 0.0
      %269 = vst.msk [vmem:[#allocation3 + $0x90] sm:$0x1] %vm259, 0.0
      %270 = vst.msk [vmem:[#allocation3 + $0x9] sm:$0x1] %vm259, 0.0
      %271 = vst.msk [vmem:[#allocation3 + $0x19] sm:$0x1] %vm259, 0.0
      %272 = vst.msk [vmem:[#allocation3 + $0x29] sm:$0x1] %vm259, 0.0
      %273 = vst.msk [vmem:[#allocation3 + $0x39] sm:$0x1] %vm259, 0.0
      %274 = vst.msk [vmem:[#allocation3 + $0x49] sm:$0x1] %vm259, 0.0
      %275 = vst.msk [vmem:[#allocation3 + $0x59] sm:$0x1] %vm259, 0.0
      %276 = vst.msk [vmem:[#allocation3 + $0x69] sm:$0x1] %vm259, 0.0
      %277 = vst.msk [vmem:[#allocation3 + $0x79] sm:$0x1] %vm259, 0.0
      %278 = vst.msk [vmem:[#allocation3 + $0x89] sm:$0x1] %vm259, 0.0
      %279 = vst.msk [vmem:[#allocation3 + $0x99] sm:$0x1] %vm259, 0.0
      %v280 = vld [vmem:[%s218] sm:$0x3]
      %v281 = vld [vmem:[%s218 + $0x2] sm:$0x3]
      %v282 = vld [vmem:[%s218 + $0x4] sm:$0x3]
      %v283 = vld [vmem:[%s218 + $0x6] sm:$0x3]
      %v284 = vld [vmem:[%s218 + $0x8] sm:$0x3]
      %v285 = vld [vmem:[%s218 + $0xa] sm:$0x3]
      %v286 = vld [vmem:[%s218 + $0xc] sm:$0x3]
      %v287 = vld [vmem:[%s218 + $0xe] sm:$0x3]
      %v288 = vld [vmem:[%s218 + $0x10] sm:$0x3]
      %v289 = vld [vmem:[%s218 + $0x12] sm:$0x3]
      %v290 = vld [vmem:[%s218 + $0x14] sm:$0x3]
      %v291 = vld [vmem:[%s218 + $0x16] sm:$0x3]
      %v292 = vld [vmem:[%s218 + $0x18] sm:$0x3]
      %v293 = vld [vmem:[%s218 + $0x1a] sm:$0x3]
      %v294 = vld [vmem:[%s218 + $0x1c] sm:$0x3]
      %v295 = vld [vmem:[%s218 + $0x1e] sm:$0x3]
      %v296 = vld [vmem:[%s218 + $0x20] sm:$0x3]
      %v297 = vld [vmem:[%s218 + $0x22] sm:$0x3]
      %v298 = vld [vmem:[%s218 + $0x24] sm:$0x3]
      %v299 = vld [vmem:[%s218 + $0x26] sm:$0x3]
      %v300 = vld [vmem:[%s218 + $0x28] sm:$0x3]
      %v301 = vld [vmem:[%s218 + $0x2a] sm:$0x3]
      %v302 = vld [vmem:[%s218 + $0x2c] sm:$0x3]
      %v303 = vld [vmem:[%s218 + $0x2e] sm:$0x3]
      %v304 = vld [vmem:[%s218 + $0x30] sm:$0x3]
      %v305 = vld [vmem:[%s218 + $0x32] sm:$0x3]
      %v306 = vld [vmem:[%s218 + $0x34] sm:$0x3]
      %v307 = vld [vmem:[%s218 + $0x36] sm:$0x3]
      %v308 = vld [vmem:[%s218 + $0x38] sm:$0x3]
      %v309 = vld [vmem:[%s218 + $0x3a] sm:$0x3]
      %v310 = vld [vmem:[%s218 + $0x3c] sm:$0x3]
      %v311 = vld [vmem:[%s218 + $0x3e] sm:$0x3]
      %v312 = vld [vmem:[%s218 + $0x40] sm:$0x3]
      %v313 = vld [vmem:[%s218 + $0x42] sm:$0x3]
      %v314 = vld [vmem:[%s218 + $0x44] sm:$0x3]
      %v315 = vld [vmem:[%s218 + $0x46] sm:$0x3]
      %v316 = vld [vmem:[%s218 + $0x48] sm:$0x3]
      %v317 = vld [vmem:[%s218 + $0x4a] sm:$0x3]
      %v318 = vld [vmem:[%s218 + $0x4c] sm:$0x3]
      %v319 = vld [vmem:[%s218 + $0x4e] sm:$0x3]
      %v320 = vld [vmem:[%s218 + $0x50] sm:$0x3]
      %v321 = vld [vmem:[%s218 + $0x52] sm:$0x3]
      %v322 = vld [vmem:[%s218 + $0x54] sm:$0x3]
      %v323 = vld [vmem:[%s218 + $0x56] sm:$0x3]
      %v324 = vld [vmem:[%s218 + $0x58] sm:$0x3]
      %v325 = vld [vmem:[%s218 + $0x5a] sm:$0x3]
      %v326 = vld [vmem:[%s218 + $0x5c] sm:$0x3]
      %v327 = vld [vmem:[%s218 + $0x5e] sm:$0x3]
      %v328 = vld [vmem:[%s218 + $0x60] sm:$0x3]
      %v329 = vld [vmem:[%s218 + $0x62] sm:$0x3]
      %v330 = vld [vmem:[%s218 + $0x64] sm:$0x3]
      %v331 = vld [vmem:[%s218 + $0x66] sm:$0x3]
      %v332 = vld [vmem:[%s218 + $0x68] sm:$0x3]
      %v333 = vld [vmem:[%s218 + $0x6a] sm:$0x3]
      %v334 = vld [vmem:[%s218 + $0x6c] sm:$0x3]
      %v335 = vld [vmem:[%s218 + $0x6e] sm:$0x3]
      %v336 = vld [vmem:[%s218 + $0x70] sm:$0x3]
      %v337 = vld [vmem:[%s218 + $0x72] sm:$0x3]
      %v338 = vld [vmem:[%s218 + $0x74] sm:$0x3]
      %v339 = vld [vmem:[%s218 + $0x76] sm:$0x3]
      %v340 = vld [vmem:[%s218 + $0x78] sm:$0x3]
      %v341 = vld [vmem:[%s218 + $0x7a] sm:$0x3]
      %v342 = vld [vmem:[%s218 + $0x7c] sm:$0x3]
      %v343 = vld [vmem:[%s218 + $0x7e] sm:$0x3]
      %v344 = vld [vmem:[%s218 + $0x80] sm:$0x3]
      %v345 = vld [vmem:[%s218 + $0x82] sm:$0x3]
      %v346 = vld [vmem:[%s218 + $0x84] sm:$0x3]
      %v347 = vld [vmem:[%s218 + $0x86] sm:$0x3]
      %v348 = vld [vmem:[%s218 + $0x88] sm:$0x3]
      %v349 = vld [vmem:[%s218 + $0x8a] sm:$0x3]
      %v350 = vld [vmem:[%s218 + $0x8c] sm:$0x3]
      %v351 = vld [vmem:[%s218 + $0x8e] sm:$0x3]
      %v352 = vld [vmem:[%s218 + $0x90] sm:$0x3]
      %v353 = vld [vmem:[%s218 + $0x92] sm:$0x3]
      %v354 = vld [vmem:[%s218 + $0x94] sm:$0x3]
      %v355 = vld [vmem:[%s218 + $0x96] sm:$0x3]
      %v356 = vld [vmem:[%s218 + $0x98] sm:$0x3]
      %v357 = vld [vmem:[%s218 + $0x9a] sm:$0x3]
      %v358 = vld [vmem:[%s218 + $0x9c] sm:$0x3]
      %v359 = vld [vmem:[%s218 + $0x9e] sm:$0x3]
      %v360 = vld [vmem:[%s218 + $0xa0] sm:$0x3]
      %v361 = vld [vmem:[%s218 + $0xa2] sm:$0x3]
      %v362 = vld [vmem:[%s218 + $0xa4] sm:$0x3]
      %v363 = vld [vmem:[%s218 + $0xa6] sm:$0x3]
      %v364 = vld [vmem:[%s218 + $0xa8] sm:$0x3]
      %v365 = vld [vmem:[%s218 + $0xaa] sm:$0x3]
      %v366 = vld [vmem:[%s218 + $0xac] sm:$0x3]
      %v367 = vld [vmem:[%s218 + $0xae] sm:$0x3]
      %v368 = vld [vmem:[%s218 + $0xb0] sm:$0x3]
      %v369 = vld [vmem:[%s218 + $0xb2] sm:$0x3]
      %v370 = vld [vmem:[%s218 + $0xb4] sm:$0x3]
      %v371 = vld [vmem:[%s218 + $0xb6] sm:$0x3]
      %v372 = vld [vmem:[%s218 + $0xb8] sm:$0x3]
      %v373 = vld [vmem:[%s218 + $0xba] sm:$0x3]
      %v374 = vld [vmem:[%s218 + $0xbc] sm:$0x3]
      %v375 = vld [vmem:[%s218 + $0xbe] sm:$0x3]
      %v376 = vld [vmem:[%s218 + $0xc0] sm:$0x3]
      %v377 = vld [vmem:[%s218 + $0xc2] sm:$0x3]
      %v378 = vld [vmem:[%s218 + $0xc4] sm:$0x3]
      %v379 = vld [vmem:[%s218 + $0xc6] sm:$0x3]
      %v380 = vld [vmem:[%s218 + $0xc8] sm:$0x3]
      %v381 = vld [vmem:[%s218 + $0xca] sm:$0x3]
      %v382 = vld [vmem:[%s218 + $0xcc] sm:$0x3]
      %v383 = vld [vmem:[%s218 + $0xce] sm:$0x3]
      %v384 = vld [vmem:[%s218 + $0xd0] sm:$0x3]
      %v385 = vld [vmem:[%s218 + $0xd2] sm:$0x3]
      %v386 = vld [vmem:[%s218 + $0xd4] sm:$0x3]
      %v387 = vld [vmem:[%s218 + $0xd6] sm:$0x3]
      %v388 = vld [vmem:[%s218 + $0xd8] sm:$0x3]
      %v389 = vld [vmem:[%s218 + $0xda] sm:$0x3]
      %v390 = vld [vmem:[%s218 + $0xdc] sm:$0x3]
      %v391 = vld [vmem:[%s218 + $0xde] sm:$0x3]
      %v392 = vld [vmem:[%s218 + $0xe0] sm:$0x3]
      %v393 = vld [vmem:[%s218 + $0xe2] sm:$0x3]
      %v394 = vld [vmem:[%s218 + $0xe4] sm:$0x3]
      %v395 = vld [vmem:[%s218 + $0xe6] sm:$0x3]
      %v396 = vld [vmem:[%s218 + $0xe8] sm:$0x3]
      %v397 = vld [vmem:[%s218 + $0xea] sm:$0x3]
      %v398 = vld [vmem:[%s218 + $0xec] sm:$0x3]
      %v399 = vld [vmem:[%s218 + $0xee] sm:$0x3]
      %v400 = vld [vmem:[%s218 + $0xf0] sm:$0x3]
      %v401 = vld [vmem:[%s218 + $0xf2] sm:$0x3]
      %v402 = vld [vmem:[%s218 + $0xf4] sm:$0x3]
      %v403 = vld [vmem:[%s218 + $0xf6] sm:$0x3]
      %v404 = vld [vmem:[%s218 + $0xf8] sm:$0x3]
      %v405 = vld [vmem:[%s218 + $0xfa] sm:$0x3]
      %v406 = vld [vmem:[%s218 + $0xfc] sm:$0x3]
      %v407 = vld [vmem:[%s218 + $0xfe] sm:$0x3]
      %v536 = vrot.slane %v280, 1
      %v537 = vrot.slane %v281, 1
      %v538 = vrot.slane %v282, 1
      %v539 = vrot.slane %v283, 1
      %v540 = vrot.slane %v284, 1
      %v541 = vrot.slane %v285, 1
      %v542 = vrot.slane %v286, 1
      %v543 = vrot.slane %v287, 1
      %v544 = vrot.slane %v288, 1
      %v545 = vrot.slane %v289, 1
      %v546 = vrot.slane %v290, 1
      %v547 = vrot.slane %v291, 1
      %v548 = vrot.slane %v292, 1
      %v549 = vrot.slane %v293, 1
      %v550 = vrot.slane %v294, 1
      %v551 = vrot.slane %v295, 1
      %v552 = vrot.slane %v296, 1
      %v553 = vrot.slane %v297, 1
      %v554 = vrot.slane %v298, 1
      %v555 = vrot.slane %v299, 1
      %v556 = vrot.slane %v300, 1
      %v557 = vrot.slane %v301, 1
      %v558 = vrot.slane %v302, 1
      %v559 = vrot.slane %v303, 1
      %v560 = vrot.slane %v304, 1
      %v561 = vrot.slane %v305, 1
      %v562 = vrot.slane %v306, 1
      %v563 = vrot.slane %v307, 1
      %v564 = vrot.slane %v308, 1
      %v565 = vrot.slane %v309, 1
      %v566 = vrot.slane %v310, 1
      %v567 = vrot.slane %v311, 1
      %v568 = vrot.slane %v312, 1
      %v569 = vrot.slane %v313, 1
      %v570 = vrot.slane %v314, 1
      %v571 = vrot.slane %v315, 1
      %v572 = vrot.slane %v316, 1
      %v573 = vrot.slane %v317, 1
      %v574 = vrot.slane %v318, 1
      %v575 = vrot.slane %v319, 1
      %v576 = vrot.slane %v320, 1
      %v577 = vrot.slane %v321, 1
      %v578 = vrot.slane %v322, 1
      %v579 = vrot.slane %v323, 1
      %v580 = vrot.slane %v324, 1
      %v581 = vrot.slane %v325, 1
      %v582 = vrot.slane %v326, 1
      %v583 = vrot.slane %v327, 1
      %v584 = vrot.slane %v328, 1
      %v585 = vrot.slane %v329, 1
      %v586 = vrot.slane %v330, 1
      %v587 = vrot.slane %v331, 1
      %v588 = vrot.slane %v332, 1
      %v589 = vrot.slane %v333, 1
      %v590 = vrot.slane %v334, 1
      %v591 = vrot.slane %v335, 1
      %v592 = vrot.slane %v336, 1
      %v593 = vrot.slane %v337, 1
      %v594 = vrot.slane %v338, 1
      %v595 = vrot.slane %v339, 1
      %v596 = vrot.slane %v340, 1
      %v597 = vrot.slane %v341, 1
      %v598 = vrot.slane %v342, 1
      %v599 = vrot.slane %v343, 1
      %v600 = vrot.slane %v344, 1
      %v601 = vrot.slane %v345, 1
      %v602 = vrot.slane %v346, 1
      %v603 = vrot.slane %v347, 1
      %v604 = vrot.slane %v348, 1
      %v605 = vrot.slane %v349, 1
      %v606 = vrot.slane %v350, 1
      %v607 = vrot.slane %v351, 1
      %v608 = vrot.slane %v352, 1
      %v609 = vrot.slane %v353, 1
      %v610 = vrot.slane %v354, 1
      %v611 = vrot.slane %v355, 1
      %v612 = vrot.slane %v356, 1
      %v613 = vrot.slane %v357, 1
      %v614 = vrot.slane %v358, 1
      %v615 = vrot.slane %v359, 1
      %v616 = vrot.slane %v360, 1
      %v617 = vrot.slane %v361, 1
      %v618 = vrot.slane %v362, 1
      %v619 = vrot.slane %v363, 1
      %v620 = vrot.slane %v364, 1
      %v621 = vrot.slane %v365, 1
      %v622 = vrot.slane %v366, 1
      %v623 = vrot.slane %v367, 1
      %v624 = vrot.slane %v368, 1
      %v625 = vrot.slane %v369, 1
      %v626 = vrot.slane %v370, 1
      %v627 = vrot.slane %v371, 1
      %v628 = vrot.slane %v372, 1
      %v629 = vrot.slane %v373, 1
      %v630 = vrot.slane %v374, 1
      %v631 = vrot.slane %v375, 1
      %v632 = vrot.slane %v376, 1
      %v633 = vrot.slane %v377, 1
      %v634 = vrot.slane %v378, 1
      %v635 = vrot.slane %v379, 1
      %v636 = vrot.slane %v380, 1
      %v637 = vrot.slane %v381, 1
      %v638 = vrot.slane %v382, 1
      %v639 = vrot.slane %v383, 1
      %v640 = vrot.slane %v384, 1
      %v641 = vrot.slane %v385, 1
      %v642 = vrot.slane %v386, 1
      %v643 = vrot.slane %v387, 1
      %v644 = vrot.slane %v388, 1
      %v645 = vrot.slane %v389, 1
      %v646 = vrot.slane %v390, 1
      %v647 = vrot.slane %v391, 1
      %v648 = vrot.slane %v392, 1
      %v649 = vrot.slane %v393, 1
      %v650 = vrot.slane %v394, 1
      %v651 = vrot.slane %v395, 1
      %v652 = vrot.slane %v396, 1
      %v653 = vrot.slane %v397, 1
      %v654 = vrot.slane %v398, 1
      %v655 = vrot.slane %v399, 1
      %v656 = vrot.slane %v400, 1
      %v657 = vrot.slane %v401, 1
      %v658 = vrot.slane %v402, 1
      %v659 = vrot.slane %v403, 1
      %v660 = vrot.slane %v404, 1
      %v661 = vrot.slane %v405, 1
      %v662 = vrot.slane %v406, 1
      %v663 = vrot.slane %v407, 1
      %v792 = vmax.f32 %v280, %v536
      %v793 = vmax.f32 %v281, %v537
      %v794 = vmax.f32 %v282, %v538
      %v795 = vmax.f32 %v283, %v539
      %v796 = vmax.f32 %v284, %v540
      %v797 = vmax.f32 %v285, %v541
      %v798 = vmax.f32 %v286, %v542
      %v799 = vmax.f32 %v287, %v543
      %v800 = vmax.f32 %v288, %v544
      %v801 = vmax.f32 %v289, %v545
      %v802 = vmax.f32 %v290, %v546
      %v803 = vmax.f32 %v291, %v547
      %v804 = vmax.f32 %v292, %v548
      %v805 = vmax.f32 %v293, %v549
      %v806 = vmax.f32 %v294, %v550
      %v807 = vmax.f32 %v295, %v551
      %v808 = vmax.f32 %v296, %v552
      %v809 = vmax.f32 %v297, %v553
      %v810 = vmax.f32 %v298, %v554
      %v811 = vmax.f32 %v299, %v555
      %v812 = vmax.f32 %v300, %v556
      %v813 = vmax.f32 %v301, %v557
      %v814 = vmax.f32 %v302, %v558
      %v815 = vmax.f32 %v303, %v559
      %v816 = vmax.f32 %v304, %v560
      %v817 = vmax.f32 %v305, %v561
      %v818 = vmax.f32 %v306, %v562
      %v819 = vmax.f32 %v307, %v563
      %v820 = vmax.f32 %v308, %v564
      %v821 = vmax.f32 %v309, %v565
      %v822 = vmax.f32 %v310, %v566
      %v823 = vmax.f32 %v311, %v567
      %v824 = vmax.f32 %v312, %v568
      %v825 = vmax.f32 %v313, %v569
      %v826 = vmax.f32 %v314, %v570
      %v827 = vmax.f32 %v315, %v571
      %v828 = vmax.f32 %v316, %v572
      %v829 = vmax.f32 %v317, %v573
      %v830 = vmax.f32 %v318, %v574
      %v831 = vmax.f32 %v319, %v575
      %v832 = vmax.f32 %v320, %v576
      %v833 = vmax.f32 %v321, %v577
      %v834 = vmax.f32 %v322, %v578
      %v835 = vmax.f32 %v323, %v579
      %v836 = vmax.f32 %v324, %v580
      %v837 = vmax.f32 %v325, %v581
      %v838 = vmax.f32 %v326, %v582
      %v839 = vmax.f32 %v327, %v583
      %v840 = vmax.f32 %v328, %v584
      %v841 = vmax.f32 %v329, %v585
      %v842 = vmax.f32 %v330, %v586
      %v843 = vmax.f32 %v331, %v587
      %v844 = vmax.f32 %v332, %v588
      %v845 = vmax.f32 %v333, %v589
      %v846 = vmax.f32 %v334, %v590
      %v847 = vmax.f32 %v335, %v591
      %v848 = vmax.f32 %v336, %v592
      %v849 = vmax.f32 %v337, %v593
      %v850 = vmax.f32 %v338, %v594
      %v851 = vmax.f32 %v339, %v595
      %v852 = vmax.f32 %v340, %v596
      %v853 = vmax.f32 %v341, %v597
      %v854 = vmax.f32 %v342, %v598
      %v855 = vmax.f32 %v343, %v599
      %v856 = vmax.f32 %v344, %v600
      %v857 = vmax.f32 %v345, %v601
      %v858 = vmax.f32 %v346, %v602
      %v859 = vmax.f32 %v347, %v603
      %v860 = vmax.f32 %v348, %v604
      %v861 = vmax.f32 %v349, %v605
      %v862 = vmax.f32 %v350, %v606
      %v863 = vmax.f32 %v351, %v607
      %v864 = vmax.f32 %v352, %v608
      %v865 = vmax.f32 %v353, %v609
      %v866 = vmax.f32 %v354, %v610
      %v867 = vmax.f32 %v355, %v611
      %v868 = vmax.f32 %v356, %v612
      %v869 = vmax.f32 %v357, %v613
      %v870 = vmax.f32 %v358, %v614
      %v871 = vmax.f32 %v359, %v615
      %v872 = vmax.f32 %v360, %v616
      %v873 = vmax.f32 %v361, %v617
      %v874 = vmax.f32 %v362, %v618
      %v875 = vmax.f32 %v363, %v619
      %v876 = vmax.f32 %v364, %v620
      %v877 = vmax.f32 %v365, %v621
      %v878 = vmax.f32 %v366, %v622
      %v879 = vmax.f32 %v367, %v623
      %v880 = vmax.f32 %v368, %v624
      %v881 = vmax.f32 %v369, %v625
      %v882 = vmax.f32 %v370, %v626
      %v883 = vmax.f32 %v371, %v627
      %v884 = vmax.f32 %v372, %v628
      %v885 = vmax.f32 %v373, %v629
      %v886 = vmax.f32 %v374, %v630
      %v887 = vmax.f32 %v375, %v631
      %v888 = vmax.f32 %v376, %v632
      %v889 = vmax.f32 %v377, %v633
      %v890 = vmax.f32 %v378, %v634
      %v891 = vmax.f32 %v379, %v635
      %v892 = vmax.f32 %v380, %v636
      %v893 = vmax.f32 %v381, %v637
      %v894 = vmax.f32 %v382, %v638
      %v895 = vmax.f32 %v383, %v639
      %v896 = vmax.f32 %v384, %v640
      %v897 = vmax.f32 %v385, %v641
      %v898 = vmax.f32 %v386, %v642
      %v899 = vmax.f32 %v387, %v643
      %v900 = vmax.f32 %v388, %v644
      %v901 = vmax.f32 %v389, %v645
      %v902 = vmax.f32 %v390, %v646
      %v903 = vmax.f32 %v391, %v647
      %v904 = vmax.f32 %v392, %v648
      %v905 = vmax.f32 %v393, %v649
      %v906 = vmax.f32 %v394, %v650
      %v907 = vmax.f32 %v395, %v651
      %v908 = vmax.f32 %v396, %v652
      %v909 = vmax.f32 %v397, %v653
      %v910 = vmax.f32 %v398, %v654
      %v911 = vmax.f32 %v399, %v655
      %v912 = vmax.f32 %v400, %v656
      %v913 = vmax.f32 %v401, %v657
      %v914 = vmax.f32 %v402, %v658
      %v915 = vmax.f32 %v403, %v659
      %v916 = vmax.f32 %v404, %v660
      %v917 = vmax.f32 %v405, %v661
      %v918 = vmax.f32 %v406, %v662
      %v919 = vmax.f32 %v407, %v663
      %v920 = vmax.f32 %v792, %v800
      %v921 = vmax.f32 %v793, %v801
      %v922 = vmax.f32 %v794, %v802
      %v923 = vmax.f32 %v795, %v803
      %v924 = vmax.f32 %v796, %v804
      %v925 = vmax.f32 %v797, %v805
      %v926 = vmax.f32 %v798, %v806
      %v927 = vmax.f32 %v799, %v807
      %v928 = vmax.f32 %v808, %v816
      %v929 = vmax.f32 %v809, %v817
      %v930 = vmax.f32 %v810, %v818
      %v931 = vmax.f32 %v811, %v819
      %v932 = vmax.f32 %v812, %v820
      %v933 = vmax.f32 %v813, %v821
      %v934 = vmax.f32 %v814, %v822
      %v935 = vmax.f32 %v815, %v823
      %v936 = vmax.f32 %v824, %v832
      %v937 = vmax.f32 %v825, %v833
      %v938 = vmax.f32 %v826, %v834
      %v939 = vmax.f32 %v827, %v835
      %v940 = vmax.f32 %v828, %v836
      %v941 = vmax.f32 %v829, %v837
      %v942 = vmax.f32 %v830, %v838
      %v943 = vmax.f32 %v831, %v839
      %v944 = vmax.f32 %v840, %v848
      %v945 = vmax.f32 %v841, %v849
      %v946 = vmax.f32 %v842, %v850
      %v947 = vmax.f32 %v843, %v851
      %v948 = vmax.f32 %v844, %v852
      %v949 = vmax.f32 %v845, %v853
      %v950 = vmax.f32 %v846, %v854
      %v951 = vmax.f32 %v847, %v855
      %v952 = vmax.f32 %v856, %v864
      %v953 = vmax.f32 %v857, %v865
      %v954 = vmax.f32 %v858, %v866
      %v955 = vmax.f32 %v859, %v867
      %v956 = vmax.f32 %v860, %v868
      %v957 = vmax.f32 %v861, %v869
      %v958 = vmax.f32 %v862, %v870
      %v959 = vmax.f32 %v863, %v871
      %v960 = vmax.f32 %v872, %v880
      %v961 = vmax.f32 %v873, %v881
      %v962 = vmax.f32 %v874, %v882
      %v963 = vmax.f32 %v875, %v883
      %v964 = vmax.f32 %v876, %v884
      %v965 = vmax.f32 %v877, %v885
      %v966 = vmax.f32 %v878, %v886
      %v967 = vmax.f32 %v879, %v887
      %v968 = vmax.f32 %v888, %v896
      %v969 = vmax.f32 %v889, %v897
      %v970 = vmax.f32 %v890, %v898
      %v971 = vmax.f32 %v891, %v899
      %v972 = vmax.f32 %v892, %v900
      %v973 = vmax.f32 %v893, %v901
      %v974 = vmax.f32 %v894, %v902
      %v975 = vmax.f32 %v895, %v903
      %v976 = vmax.f32 %v904, %v912
      %v977 = vmax.f32 %v905, %v913
      %v978 = vmax.f32 %v906, %v914
      %v979 = vmax.f32 %v907, %v915
      %v980 = vmax.f32 %v908, %v916
      %v981 = vmax.f32 %v909, %v917
      %v982 = vmax.f32 %v910, %v918
      %v983 = vmax.f32 %v911, %v919
      %v1048 = vrot.slane %v921, 7
      %vm1049 = vcmask 1041409
      %v1050 = vsel %vm1049, %v1048, %v920
      %v1051 = vrot.slane %v922, 6
      %vm1052 = vcmask 1042434
      %v1053 = vsel %vm1052, %v1051, %v1050
      %v1054 = vrot.slane %v923, 5
      %vm1055 = vcmask 1043459
      %v1056 = vsel %vm1055, %v1054, %v1053
      %v1057 = vrot.slane %v924, 4
      %vm1058 = vcmask 1044484
      %v1059 = vsel %vm1058, %v1057, %v1056
      %v1060 = vrot.slane %v925, 3
      %vm1061 = vcmask 1045509
      %v1062 = vsel %vm1061, %v1060, %v1059
      %v1063 = vrot.slane %v926, 2
      %vm1064 = vcmask 1046534
      %v1065 = vsel %vm1064, %v1063, %v1062
      %v1066 = vrot.slane %v927, 1
      %vm1067 = vcmask 1047559
      %v1068 = vsel %vm1067, %v1066, %v1065
      %v1069 = vrot.slane %v929, 7
      %v1070 = vsel %vm1049, %v1069, %v928
      %v1071 = vrot.slane %v930, 6
      %v1072 = vsel %vm1052, %v1071, %v1070
      %v1073 = vrot.slane %v931, 5
      %v1074 = vsel %vm1055, %v1073, %v1072
      %v1075 = vrot.slane %v932, 4
      %v1076 = vsel %vm1058, %v1075, %v1074
      %v1077 = vrot.slane %v933, 3
      %v1078 = vsel %vm1061, %v1077, %v1076
      %v1079 = vrot.slane %v934, 2
      %v1080 = vsel %vm1064, %v1079, %v1078
      %v1081 = vrot.slane %v935, 1
      %v1082 = vsel %vm1067, %v1081, %v1080
      %v1083 = vrot.slane %v937, 7
      %v1084 = vsel %vm1049, %v1083, %v936
      %v1085 = vrot.slane %v938, 6
      %v1086 = vsel %vm1052, %v1085, %v1084
      %v1087 = vrot.slane %v939, 5
      %v1088 = vsel %vm1055, %v1087, %v1086
      %v1089 = vrot.slane %v940, 4
      %v1090 = vsel %vm1058, %v1089, %v1088
      %v1091 = vrot.slane %v941, 3
      %v1092 = vsel %vm1061, %v1091, %v1090
      %v1093 = vrot.slane %v942, 2
      %v1094 = vsel %vm1064, %v1093, %v1092
      %v1095 = vrot.slane %v943, 1
      %v1096 = vsel %vm1067, %v1095, %v1094
      %v1097 = vrot.slane %v945, 7
      %v1098 = vsel %vm1049, %v1097, %v944
      %v1099 = vrot.slane %v946, 6
      %v1100 = vsel %vm1052, %v1099, %v1098
      %v1101 = vrot.slane %v947, 5
      %v1102 = vsel %vm1055, %v1101, %v1100
      %v1103 = vrot.slane %v948, 4
      %v1104 = vsel %vm1058, %v1103, %v1102
      %v1105 = vrot.slane %v949, 3
      %v1106 = vsel %vm1061, %v1105, %v1104
      %v1107 = vrot.slane %v950, 2
      %v1108 = vsel %vm1064, %v1107, %v1106
      %v1109 = vrot.slane %v951, 1
      %v1110 = vsel %vm1067, %v1109, %v1108
      %v1111 = vrot.slane %v953, 7
      %v1112 = vsel %vm1049, %v1111, %v952
      %v1113 = vrot.slane %v954, 6
      %v1114 = vsel %vm1052, %v1113, %v1112
      %v1115 = vrot.slane %v955, 5
      %v1116 = vsel %vm1055, %v1115, %v1114
      %v1117 = vrot.slane %v956, 4
      %v1118 = vsel %vm1058, %v1117, %v1116
      %v1119 = vrot.slane %v957, 3
      %v1120 = vsel %vm1061, %v1119, %v1118
      %v1121 = vrot.slane %v958, 2
      %v1122 = vsel %vm1064, %v1121, %v1120
      %v1123 = vrot.slane %v959, 1
      %v1124 = vsel %vm1067, %v1123, %v1122
      %v1125 = vrot.slane %v961, 7
      %v1126 = vsel %vm1049, %v1125, %v960
      %v1127 = vrot.slane %v962, 6
      %v1128 = vsel %vm1052, %v1127, %v1126
      %v1129 = vrot.slane %v963, 5
      %v1130 = vsel %vm1055, %v1129, %v1128
      %v1131 = vrot.slane %v964, 4
      %v1132 = vsel %vm1058, %v1131, %v1130
      %v1133 = vrot.slane %v965, 3
      %v1134 = vsel %vm1061, %v1133, %v1132
      %v1135 = vrot.slane %v966, 2
      %v1136 = vsel %vm1064, %v1135, %v1134
      %v1137 = vrot.slane %v967, 1
      %v1138 = vsel %vm1067, %v1137, %v1136
      %v1139 = vrot.slane %v969, 7
      %v1140 = vsel %vm1049, %v1139, %v968
      %v1141 = vrot.slane %v970, 6
      %v1142 = vsel %vm1052, %v1141, %v1140
      %v1143 = vrot.slane %v971, 5
      %v1144 = vsel %vm1055, %v1143, %v1142
      %v1145 = vrot.slane %v972, 4
      %v1146 = vsel %vm1058, %v1145, %v1144
      %v1147 = vrot.slane %v973, 3
      %v1148 = vsel %vm1061, %v1147, %v1146
      %v1149 = vrot.slane %v974, 2
      %v1150 = vsel %vm1064, %v1149, %v1148
      %v1151 = vrot.slane %v975, 1
      %v1152 = vsel %vm1067, %v1151, %v1150
      %v1153 = vrot.slane %v977, 7
      %v1154 = vsel %vm1049, %v1153, %v976
      %v1155 = vrot.slane %v978, 6
      %v1156 = vsel %vm1052, %v1155, %v1154
      %v1157 = vrot.slane %v979, 5
      %v1158 = vsel %vm1055, %v1157, %v1156
      %v1159 = vrot.slane %v980, 4
      %v1160 = vsel %vm1058, %v1159, %v1158
      %v1161 = vrot.slane %v981, 3
      %v1162 = vsel %vm1061, %v1161, %v1160
      %v1163 = vrot.slane %v982, 2
      %v1164 = vsel %vm1064, %v1163, %v1162
      %v1165 = vrot.slane %v983, 1
      %v1166 = vsel %vm1067, %v1165, %v1164
      %s1175 = scalar_lea.vmem [#allocation2], 16
      %1176 = vst.msk [vmem:[%s1175 + $0x1] sm:$0xff] %vm224, %v1068
      %1177 = vst.msk [vmem:[%s1175 + $0x11] sm:$0xff] %vm224, %v1082
      %1178 = vst.msk [vmem:[%s1175 + $0x21] sm:$0xff] %vm224, %v1096
      %1179 = vst.msk [vmem:[%s1175 + $0x31] sm:$0xff] %vm224, %v1110
      %1180 = vst.msk [vmem:[%s1175 + $0x41] sm:$0xff] %vm224, %v1124
      %1181 = vst.msk [vmem:[%s1175 + $0x51] sm:$0xff] %vm224, %v1138
      %1182 = vst.msk [vmem:[%s1175 + $0x61] sm:$0xff] %vm224, %v1152
      %1183 = vst.msk [vmem:[%s1175 + $0x71] sm:$0xff] %vm224, %v1166
      %v1184 = vld [vmem:[#allocation2] sm:$0xff]
      %v1185 = vld [vmem:[#allocation2 + $0x8] sm:$0x3]
      %v1186 = vld [vmem:[#allocation2 + $0x10] sm:$0xff]
      %v1187 = vld [vmem:[#allocation2 + $0x18] sm:$0x3]
      %v1188 = vld [vmem:[#allocation2 + $0x20] sm:$0xff]
      %v1189 = vld [vmem:[#allocation2 + $0x28] sm:$0x3]
      %v1190 = vld [vmem:[#allocation2 + $0x30] sm:$0xff]
      %v1191 = vld [vmem:[#allocation2 + $0x38] sm:$0x3]
      %v1192 = vld [vmem:[#allocation2 + $0x40] sm:$0xff]
      %v1193 = vld [vmem:[#allocation2 + $0x48] sm:$0x3]
      %v1194 = vld [vmem:[#allocation2 + $0x50] sm:$0xff]
      %v1195 = vld [vmem:[#allocation2 + $0x58] sm:$0x3]
      %v1196 = vld [vmem:[#allocation2 + $0x60] sm:$0xff]
      %v1197 = vld [vmem:[#allocation2 + $0x68] sm:$0x3]
      %v1198 = vld [vmem:[#allocation2 + $0x70] sm:$0xff]
      %v1199 = vld [vmem:[#allocation2 + $0x78] sm:$0x3]
      %v1200 = vld [vmem:[%s1175] sm:$0xff]
      %v1201 = vld [vmem:[%s1175 + $0x8] sm:$0x3]
      %v1202 = vld [vmem:[%s1175 + $0x10] sm:$0xff]
      %v1203 = vld [vmem:[%s1175 + $0x18] sm:$0x3]
      %v1204 = vld [vmem:[%s1175 + $0x20] sm:$0xff]
      %v1205 = vld [vmem:[%s1175 + $0x28] sm:$0x3]
      %v1206 = vld [vmem:[%s1175 + $0x30] sm:$0xff]
      %v1207 = vld [vmem:[%s1175 + $0x38] sm:$0x3]
      %v1208 = vld [vmem:[%s1175 + $0x40] sm:$0xff]
      %v1209 = vld [vmem:[%s1175 + $0x48] sm:$0x3]
      %v1210 = vld [vmem:[%s1175 + $0x50] sm:$0xff]
      %v1211 = vld [vmem:[%s1175 + $0x58] sm:$0x3]
      %v1212 = vld [vmem:[%s1175 + $0x60] sm:$0xff]
      %v1213 = vld [vmem:[%s1175 + $0x68] sm:$0x3]
      %v1214 = vld [vmem:[%s1175 + $0x70] sm:$0xff]
      %v1215 = vld [vmem:[%s1175 + $0x78] sm:$0x3]
      %s1216 = scalar_lea.vmem [#allocation2], 32
      %v1217 = vld [vmem:[%s1216] sm:$0xff]
      %v1218 = vld [vmem:[%s1216 + $0x8] sm:$0x3]
      %v1219 = vld [vmem:[%s1216 + $0x10] sm:$0xff]
      %v1220 = vld [vmem:[%s1216 + $0x18] sm:$0x3]
      %v1221 = vld [vmem:[%s1216 + $0x20] sm:$0xff]
      %v1222 = vld [vmem:[%s1216 + $0x28] sm:$0x3]
      %v1223 = vld [vmem:[%s1216 + $0x30] sm:$0xff]
      %v1224 = vld [vmem:[%s1216 + $0x38] sm:$0x3]
      %v1225 = vld [vmem:[%s1216 + $0x40] sm:$0xff]
      %v1226 = vld [vmem:[%s1216 + $0x48] sm:$0x3]
      %v1227 = vld [vmem:[%s1216 + $0x50] sm:$0xff]
      %v1228 = vld [vmem:[%s1216 + $0x58] sm:$0x3]
      %v1229 = vld [vmem:[%s1216 + $0x60] sm:$0xff]
      %v1230 = vld [vmem:[%s1216 + $0x68] sm:$0x3]
      %v1231 = vld [vmem:[%s1216 + $0x70] sm:$0xff]
      %v1232 = vld [vmem:[%s1216 + $0x78] sm:$0x3]
      %vm1249 = vcmask 1046528
      %v1250 = vrot.slane %v1184, 1
      %v1251 = vrot.slane %v1185, 1
      %v1252 = vsel %vm1249, %v1250, %v1251
      %v1253 = vrot.slane %v1186, 1
      %v1254 = vrot.slane %v1187, 1
      %v1255 = vsel %vm1249, %v1253, %v1254
      %v1256 = vrot.slane %v1188, 1
      %v1257 = vrot.slane %v1189, 1
      %v1258 = vsel %vm1249, %v1256, %v1257
      %v1259 = vrot.slane %v1190, 1
      %v1260 = vrot.slane %v1191, 1
      %v1261 = vsel %vm1249, %v1259, %v1260
      %v1262 = vrot.slane %v1192, 1
      %v1263 = vrot.slane %v1193, 1
      %v1264 = vsel %vm1249, %v1262, %v1263
      %v1265 = vrot.slane %v1194, 1
      %v1266 = vrot.slane %v1195, 1
      %v1267 = vsel %vm1249, %v1265, %v1266
      %v1268 = vrot.slane %v1196, 1
      %v1269 = vrot.slane %v1197, 1
      %v1270 = vsel %vm1249, %v1268, %v1269
      %v1271 = vrot.slane %v1198, 1
      %v1272 = vrot.slane %v1199, 1
      %v1273 = vsel %vm1249, %v1271, %v1272
      %1274 = vrot.lane.b32.xlu0 %v1252, 4
      %v1275 = vpop.permute.xlu0 %1274
      %1276 = vrot.lane.b32.xlu0 %v1255, 4
      %v1277 = vpop.permute.xlu0 %1276
      %1278 = vrot.lane.b32.xlu0 %v1258, 4
      %v1279 = vpop.permute.xlu0 %1278
      %1280 = vrot.lane.b32.xlu0 %v1261, 4
      %v1281 = vpop.permute.xlu0 %1280
      %1282 = vrot.lane.b32.xlu0 %v1264, 4
      %v1283 = vpop.permute.xlu0 %1282
      %1284 = vrot.lane.b32.xlu0 %v1267, 4
      %v1285 = vpop.permute.xlu0 %1284
      %1286 = vrot.lane.b32.xlu0 %v1270, 4
      %v1287 = vpop.permute.xlu0 %1286
      %1288 = vrot.lane.b32.xlu0 %v1273, 4
      %v1289 = vpop.permute.xlu0 %1288
      %vm1298 = vcmask 1045504
      %v1299 = vrot.slane %v1184, 2
      %v1300 = vrot.slane %v1185, 2
      %v1301 = vsel %vm1298, %v1299, %v1300
      %v1302 = vrot.slane %v1186, 2
      %v1303 = vrot.slane %v1187, 2
      %v1304 = vsel %vm1298, %v1302, %v1303
      %v1305 = vrot.slane %v1188, 2
      %v1306 = vrot.slane %v1189, 2
      %v1307 = vsel %vm1298, %v1305, %v1306
      %v1308 = vrot.slane %v1190, 2
      %v1309 = vrot.slane %v1191, 2
      %v1310 = vsel %vm1298, %v1308, %v1309
      %v1311 = vrot.slane %v1192, 2
      %v1312 = vrot.slane %v1193, 2
      %v1313 = vsel %vm1298, %v1311, %v1312
      %v1314 = vrot.slane %v1194, 2
      %v1315 = vrot.slane %v1195, 2
      %v1316 = vsel %vm1298, %v1314, %v1315
      %v1317 = vrot.slane %v1196, 2
      %v1318 = vrot.slane %v1197, 2
      %v1319 = vsel %vm1298, %v1317, %v1318
      %v1320 = vrot.slane %v1198, 2
      %v1321 = vrot.slane %v1199, 2
      %v1322 = vsel %vm1298, %v1320, %v1321
      %1323 = vrot.lane.b32.xlu0 %v1301, 8
      %v1324 = vpop.permute.xlu0 %1323
      %1325 = vrot.lane.b32.xlu0 %v1304, 8
      %v1326 = vpop.permute.xlu0 %1325
      %1327 = vrot.lane.b32.xlu0 %v1307, 8
      %v1328 = vpop.permute.xlu0 %1327
      %1329 = vrot.lane.b32.xlu0 %v1310, 8
      %v1330 = vpop.permute.xlu0 %1329
      %1331 = vrot.lane.b32.xlu0 %v1313, 8
      %v1332 = vpop.permute.xlu0 %1331
      %1333 = vrot.lane.b32.xlu0 %v1316, 8
      %v1334 = vpop.permute.xlu0 %1333
      %1335 = vrot.lane.b32.xlu0 %v1319, 8
      %v1336 = vpop.permute.xlu0 %1335
      %1337 = vrot.lane.b32.xlu0 %v1322, 8
      %v1338 = vpop.permute.xlu0 %1337
      %1355 = vrot.lane.b32.xlu0 %v1200, 12
      %v1356 = vpop.permute.xlu0 %1355
      %1357 = vrot.lane.b32.xlu0 %v1202, 12
      %v1358 = vpop.permute.xlu0 %1357
      %1359 = vrot.lane.b32.xlu0 %v1204, 12
      %v1360 = vpop.permute.xlu0 %1359
      %1361 = vrot.lane.b32.xlu0 %v1206, 12
      %v1362 = vpop.permute.xlu0 %1361
      %1363 = vrot.lane.b32.xlu0 %v1208, 12
      %v1364 = vpop.permute.xlu0 %1363
      %1365 = vrot.lane.b32.xlu0 %v1210, 12
      %v1366 = vpop.permute.xlu0 %1365
      %1367 = vrot.lane.b32.xlu0 %v1212, 12
      %v1368 = vpop.permute.xlu0 %1367
      %1369 = vrot.lane.b32.xlu0 %v1214, 12
      %v1370 = vpop.permute.xlu0 %1369
      %v1387 = vrot.slane %v1200, 1
      %v1388 = vrot.slane %v1201, 1
      %v1389 = vsel %vm1249, %v1387, %v1388
      %v1390 = vrot.slane %v1202, 1
      %v1391 = vrot.slane %v1203, 1
      %v1392 = vsel %vm1249, %v1390, %v1391
      %v1393 = vrot.slane %v1204, 1
      %v1394 = vrot.slane %v1205, 1
      %v1395 = vsel %vm1249, %v1393, %v1394
      %v1396 = vrot.slane %v1206, 1
      %v1397 = vrot.slane %v1207, 1
      %v1398 = vsel %vm1249, %v1396, %v1397
      %v1399 = vrot.slane %v1208, 1
      %v1400 = vrot.slane %v1209, 1
      %v1401 = vsel %vm1249, %v1399, %v1400
      %v1402 = vrot.slane %v1210, 1
      %v1403 = vrot.slane %v1211, 1
      %v1404 = vsel %vm1249, %v1402, %v1403
      %v1405 = vrot.slane %v1212, 1
      %v1406 = vrot.slane %v1213, 1
      %v1407 = vsel %vm1249, %v1405, %v1406
      %v1408 = vrot.slane %v1214, 1
      %v1409 = vrot.slane %v1215, 1
      %v1410 = vsel %vm1249, %v1408, %v1409
      %1411 = vrot.lane.b32.xlu0 %v1389, 16
      %v1412 = vpop.permute.xlu0 %1411
      %1413 = vrot.lane.b32.xlu0 %v1392, 16
      %v1414 = vpop.permute.xlu0 %1413
      %1415 = vrot.lane.b32.xlu0 %v1395, 16
      %v1416 = vpop.permute.xlu0 %1415
      %1417 = vrot.lane.b32.xlu0 %v1398, 16
      %v1418 = vpop.permute.xlu0 %1417
      %1419 = vrot.lane.b32.xlu0 %v1401, 16
      %v1420 = vpop.permute.xlu0 %1419
      %1421 = vrot.lane.b32.xlu0 %v1404, 16
      %v1422 = vpop.permute.xlu0 %1421
      %1423 = vrot.lane.b32.xlu0 %v1407, 16
      %v1424 = vpop.permute.xlu0 %1423
      %1425 = vrot.lane.b32.xlu0 %v1410, 16
      %v1426 = vpop.permute.xlu0 %1425
      %v1435 = vrot.slane %v1200, 2
      %v1436 = vrot.slane %v1201, 2
      %v1437 = vsel %vm1298, %v1435, %v1436
      %v1438 = vrot.slane %v1202, 2
      %v1439 = vrot.slane %v1203, 2
      %v1440 = vsel %vm1298, %v1438, %v1439
      %v1441 = vrot.slane %v1204, 2
      %v1442 = vrot.slane %v1205, 2
      %v1443 = vsel %vm1298, %v1441, %v1442
      %v1444 = vrot.slane %v1206, 2
      %v1445 = vrot.slane %v1207, 2
      %v1446 = vsel %vm1298, %v1444, %v1445
      %v1447 = vrot.slane %v1208, 2
      %v1448 = vrot.slane %v1209, 2
      %v1449 = vsel %vm1298, %v1447, %v1448
      %v1450 = vrot.slane %v1210, 2
      %v1451 = vrot.slane %v1211, 2
      %v1452 = vsel %vm1298, %v1450, %v1451
      %v1453 = vrot.slane %v1212, 2
      %v1454 = vrot.slane %v1213, 2
      %v1455 = vsel %vm1298, %v1453, %v1454
      %v1456 = vrot.slane %v1214, 2
      %v1457 = vrot.slane %v1215, 2
      %v1458 = vsel %vm1298, %v1456, %v1457
      %1459 = vrot.lane.b32.xlu0 %v1437, 20
      %v1460 = vpop.permute.xlu0 %1459
      %1461 = vrot.lane.b32.xlu0 %v1440, 20
      %v1462 = vpop.permute.xlu0 %1461
      %1463 = vrot.lane.b32.xlu0 %v1443, 20
      %v1464 = vpop.permute.xlu0 %1463
      %1465 = vrot.lane.b32.xlu0 %v1446, 20
      %v1466 = vpop.permute.xlu0 %1465
      %1467 = vrot.lane.b32.xlu0 %v1449, 20
      %v1468 = vpop.permute.xlu0 %1467
      %1469 = vrot.lane.b32.xlu0 %v1452, 20
      %v1470 = vpop.permute.xlu0 %1469
      %1471 = vrot.lane.b32.xlu0 %v1455, 20
      %v1472 = vpop.permute.xlu0 %1471
      %1473 = vrot.lane.b32.xlu0 %v1458, 20
      %v1474 = vpop.permute.xlu0 %1473
      %1491 = vrot.lane.b32.xlu0 %v1217, 24
      %v1492 = vpop.permute.xlu0 %1491
      %1493 = vrot.lane.b32.xlu0 %v1219, 24
      %v1494 = vpop.permute.xlu0 %1493
      %1495 = vrot.lane.b32.xlu0 %v1221, 24
      %v1496 = vpop.permute.xlu0 %1495
      %1497 = vrot.lane.b32.xlu0 %v1223, 24
      %v1498 = vpop.permute.xlu0 %1497
      %1499 = vrot.lane.b32.xlu0 %v1225, 24
      %v1500 = vpop.permute.xlu0 %1499
      %1501 = vrot.lane.b32.xlu0 %v1227, 24
      %v1502 = vpop.permute.xlu0 %1501
      %1503 = vrot.lane.b32.xlu0 %v1229, 24
      %v1504 = vpop.permute.xlu0 %1503
      %1505 = vrot.lane.b32.xlu0 %v1231, 24
      %v1506 = vpop.permute.xlu0 %1505
      %v1523 = vrot.slane %v1217, 1
      %v1524 = vrot.slane %v1218, 1
      %v1525 = vsel %vm1249, %v1523, %v1524
      %v1526 = vrot.slane %v1219, 1
      %v1527 = vrot.slane %v1220, 1
      %v1528 = vsel %vm1249, %v1526, %v1527
      %v1529 = vrot.slane %v1221, 1
      %v1530 = vrot.slane %v1222, 1
      %v1531 = vsel %vm1249, %v1529, %v1530
      %v1532 = vrot.slane %v1223, 1
      %v1533 = vrot.slane %v1224, 1
      %v1534 = vsel %vm1249, %v1532, %v1533
      %v1535 = vrot.slane %v1225, 1
      %v1536 = vrot.slane %v1226, 1
      %v1537 = vsel %vm1249, %v1535, %v1536
      %v1538 = vrot.slane %v1227, 1
      %v1539 = vrot.slane %v1228, 1
      %v1540 = vsel %vm1249, %v1538, %v1539
      %v1541 = vrot.slane %v1229, 1
      %v1542 = vrot.slane %v1230, 1
      %v1543 = vsel %vm1249, %v1541, %v1542
      %v1544 = vrot.slane %v1231, 1
      %v1545 = vrot.slane %v1232, 1
      %v1546 = vsel %vm1249, %v1544, %v1545
      %1547 = vrot.lane.b32.xlu0 %v1525, 28
      %v1548 = vpop.permute.xlu0 %1547
      %1549 = vrot.lane.b32.xlu0 %v1528, 28
      %v1550 = vpop.permute.xlu0 %1549
      %1551 = vrot.lane.b32.xlu0 %v1531, 28
      %v1552 = vpop.permute.xlu0 %1551
      %1553 = vrot.lane.b32.xlu0 %v1534, 28
      %v1554 = vpop.permute.xlu0 %1553
      %1555 = vrot.lane.b32.xlu0 %v1537, 28
      %v1556 = vpop.permute.xlu0 %1555
      %1557 = vrot.lane.b32.xlu0 %v1540, 28
      %v1558 = vpop.permute.xlu0 %1557
      %1559 = vrot.lane.b32.xlu0 %v1543, 28
      %v1560 = vpop.permute.xlu0 %1559
      %1561 = vrot.lane.b32.xlu0 %v1546, 28
      %v1562 = vpop.permute.xlu0 %1561
      %v1571 = vrot.slane %v1217, 2
      %v1572 = vrot.slane %v1218, 2
      %v1573 = vsel %vm1298, %v1571, %v1572
      %v1574 = vrot.slane %v1219, 2
      %v1575 = vrot.slane %v1220, 2
      %v1576 = vsel %vm1298, %v1574, %v1575
      %v1577 = vrot.slane %v1221, 2
      %v1578 = vrot.slane %v1222, 2
      %v1579 = vsel %vm1298, %v1577, %v1578
      %v1580 = vrot.slane %v1223, 2
      %v1581 = vrot.slane %v1224, 2
      %v1582 = vsel %vm1298, %v1580, %v1581
      %v1583 = vrot.slane %v1225, 2
      %v1584 = vrot.slane %v1226, 2
      %v1585 = vsel %vm1298, %v1583, %v1584
      %v1586 = vrot.slane %v1227, 2
      %v1587 = vrot.slane %v1228, 2
      %v1588 = vsel %vm1298, %v1586, %v1587
      %v1589 = vrot.slane %v1229, 2
      %v1590 = vrot.slane %v1230, 2
      %v1591 = vsel %vm1298, %v1589, %v1590
      %v1592 = vrot.slane %v1231, 2
      %v1593 = vrot.slane %v1232, 2
      %v1594 = vsel %vm1298, %v1592, %v1593
      %1595 = vrot.lane.b32.xlu0 %v1573, 32
      %v1596 = vpop.permute.xlu0 %1595
      %1597 = vrot.lane.b32.xlu0 %v1576, 32
      %v1598 = vpop.permute.xlu0 %1597
      %1599 = vrot.lane.b32.xlu0 %v1579, 32
      %v1600 = vpop.permute.xlu0 %1599
      %1601 = vrot.lane.b32.xlu0 %v1582, 32
      %v1602 = vpop.permute.xlu0 %1601
      %1603 = vrot.lane.b32.xlu0 %v1585, 32
      %v1604 = vpop.permute.xlu0 %1603
      %1605 = vrot.lane.b32.xlu0 %v1588, 32
      %v1606 = vpop.permute.xlu0 %1605
      %1607 = vrot.lane.b32.xlu0 %v1591, 32
      %v1608 = vpop.permute.xlu0 %1607
      %1609 = vrot.lane.b32.xlu0 %v1594, 32
      %v1610 = vpop.permute.xlu0 %1609
      %v1619 = vsel %vm224, %v1184, %v1275
      %v1620 = vsel %vm224, %v1186, %v1277
      %v1621 = vsel %vm224, %v1188, %v1279
      %v1622 = vsel %vm224, %v1190, %v1281
      %v1623 = vsel %vm224, %v1192, %v1283
      %v1624 = vsel %vm224, %v1194, %v1285
      %v1625 = vsel %vm224, %v1196, %v1287
      %v1626 = vsel %vm224, %v1198, %v1289
      %v1627 = vsel %vm252, %v1619, %v1324
      %v1628 = vsel %vm252, %v1620, %v1326
      %v1629 = vsel %vm252, %v1621, %v1328
      %v1630 = vsel %vm252, %v1622, %v1330
      %v1631 = vsel %vm252, %v1623, %v1332
      %v1632 = vsel %vm252, %v1624, %v1334
      %v1633 = vsel %vm252, %v1625, %v1336
      %v1634 = vsel %vm252, %v1626, %v1338
      %vm1635 = vcmask 97280
      %v1636 = vsel %vm1635, %v1627, %v1356
      %v1637 = vsel %vm1635, %v1628, %v1358
      %v1638 = vsel %vm1635, %v1629, %v1360
      %v1639 = vsel %vm1635, %v1630, %v1362
      %v1640 = vsel %vm1635, %v1631, %v1364
      %v1641 = vsel %vm1635, %v1632, %v1366
      %v1642 = vsel %vm1635, %v1633, %v1368
      %v1643 = vsel %vm1635, %v1634, %v1370
      %vm1644 = vcmask 130048
      %v1645 = vsel %vm1644, %v1636, %v1412
      %v1646 = vsel %vm1644, %v1637, %v1414
      %v1647 = vsel %vm1644, %v1638, %v1416
      %v1648 = vsel %vm1644, %v1639, %v1418
      %v1649 = vsel %vm1644, %v1640, %v1420
      %v1650 = vsel %vm1644, %v1641, %v1422
      %v1651 = vsel %vm1644, %v1642, %v1424
      %v1652 = vsel %vm1644, %v1643, %v1426
      %vm1653 = vcmask 162816
      %v1654 = vsel %vm1653, %v1645, %v1460
      %v1655 = vsel %vm1653, %v1646, %v1462
      %v1656 = vsel %vm1653, %v1647, %v1464
      %v1657 = vsel %vm1653, %v1648, %v1466
      %v1658 = vsel %vm1653, %v1649, %v1468
      %v1659 = vsel %vm1653, %v1650, %v1470
      %v1660 = vsel %vm1653, %v1651, %v1472
      %v1661 = vsel %vm1653, %v1652, %v1474
      %vm1662 = vcmask 195584
      %v1663 = vsel %vm1662, %v1654, %v1492
      %v1664 = vsel %vm1662, %v1655, %v1494
      %v1665 = vsel %vm1662, %v1656, %v1496
      %v1666 = vsel %vm1662, %v1657, %v1498
      %v1667 = vsel %vm1662, %v1658, %v1500
      %v1668 = vsel %vm1662, %v1659, %v1502
      %v1669 = vsel %vm1662, %v1660, %v1504
      %v1670 = vsel %vm1662, %v1661, %v1506
      %vm1671 = vcmask 228352
      %v1672 = vsel %vm1671, %v1663, %v1548
      %v1673 = vsel %vm1671, %v1664, %v1550
      %v1674 = vsel %vm1671, %v1665, %v1552
      %v1675 = vsel %vm1671, %v1666, %v1554
      %v1676 = vsel %vm1671, %v1667, %v1556
      %v1677 = vsel %vm1671, %v1668, %v1558
      %v1678 = vsel %vm1671, %v1669, %v1560
      %v1679 = vsel %vm1671, %v1670, %v1562
      %vm1680 = vcmask 261120
      %v1681 = vsel %vm1680, %v1672, %v1596
      %v1682 = vsel %vm1680, %v1673, %v1598
      %v1683 = vsel %vm1680, %v1674, %v1600
      %v1684 = vsel %vm1680, %v1675, %v1602
      %v1685 = vsel %vm1680, %v1676, %v1604
      %v1686 = vsel %vm1680, %v1677, %v1606
      %v1687 = vsel %vm1680, %v1678, %v1608
      %v1688 = vsel %vm1680, %v1679, %v1610
      %v1689 = vpack.c.bf16 %v1682, %v1681
      %v1690 = vpack.c.bf16 %v1684, %v1683
      %v1691 = vpack.c.bf16 %v1686, %v1685
      %v1692 = vpack.c.bf16 %v1688, %v1687
      %v1693 = vld [vmem:[%s1] sm:$0xf]
      %v1694 = vld [vmem:[%s1 + $0x4] sm:$0xf]
      %v1695 = vld [vmem:[%s1 + $0x8] sm:$0xf]
      %v1696 = vld [vmem:[%s1 + $0xc] sm:$0xf]
      %v1697 = vld [vmem:[%s1 + $0x10] sm:$0x3]
      %v1698 = vld [vmem:[%s2] sm:$0x1]
      %v1700 = vlaneseq
      %v1701 = vshrl.u32 %v1700, 7
      %v1702 = vsub.s32 0, %v1701
      %v1703 = vrot.slane %v1698, %v1702
      %v1710 = vunpack.c.l.b16 %v1693
      %v1711 = vunpack.c.l.b16 %v1694
      %v1712 = vunpack.c.l.b16 %v1695
      %v1713 = vunpack.c.l.b16 %v1696
      %v1714 = vunpack.c.l.b16 %v1697
      %v1715 = vpack.c.b16 %v1711, %v1710
      %v1716 = vpack.c.b16 %v1713, %v1712
      %v1717 = vpack.c.b16 %v1714, %v1714
      %vm1720 = vcmask 293888
      %v1722 = vsel %vm1720, %v1689, 0
      %v1725 = vsel %vm1720, %v1690, 0
      %v1728 = vsel %vm1720, %v1691, 0
      %v1731 = vsel %vm1720, %v1692, 0
      %vm1733 = vcmask 1041408
      %v1735 = vsel %vm1733, %v1717, 0
      %1737 = vmatprep.subr.bf16.mxu0 0
      %1738 = vmatpush1.bf16.msra.mxu0 %v1715
      %1739 = vmatprep.subr.bf16.mxu0 0
      %1740 = vmatpush1.bf16.msra.mxu0 %v1716
      %1741 = vmatprep.subr.bf16.mxu0 0
      %1742 = vmatpush1.bf16.msra.mxu0 %v1735
      %1743 = vmatprep.subr.bf16.mxu0 0
      %1744 = vmatpush1.bf16.msra.mxu0 0
      %1745 = vmatprep.subr.bf16.mxu0 0
      %1746 = vmatpush1.bf16.msra.mxu0 0
      %1747 = vmatprep.subr.bf16.mxu0 0
      %1748 = vmatpush1.bf16.msra.mxu0 0
      %1749 = vmatprep.subr.bf16.mxu0 0
      %1750 = vmatpush1.bf16.msra.mxu0 0
      %1751 = vmatprep.subr.bf16.mxu0 0
      %1752 = vmatpush1.bf16.msra.mxu0 0
      %1753 = vmatprep.subr.bf16.mxu0 0
      %1754 = vmatpush1.bf16.msra.mxu0 0
      %1755 = vmatprep.subr.bf16.mxu0 0
      %1756 = vmatpush1.bf16.msra.mxu0 0
      %1757 = vmatprep.subr.bf16.mxu0 0
      %1758 = vmatpush1.bf16.msra.mxu0 0
      %1759 = vmatprep.subr.bf16.mxu0 0
      %1760 = vmatpush1.bf16.msra.mxu0 0
      %1761 = vmatprep.subr.bf16.mxu0 0
      %1762 = vmatpush1.bf16.msra.mxu0 0
      %1763 = vmatprep.subr.bf16.mxu0 0
      %1764 = vmatpush1.bf16.msra.mxu0 0
      %1765 = vmatprep.subr.bf16.mxu0 0
      %1766 = vmatpush1.bf16.msra.mxu0 0
      %1767 = vmatprep.subr.bf16.mxu0 0
      %1768 = vmatpush1.bf16.msra.mxu0 0
      %1769 = vmatprep.mubr.bf16.mxu0 0
      %1770 = vmatmul.mubr.bf16.gmra.mrb[0].mxu0 %v1722
      %v1771 = vpop.f32.mrb[0].mxu0
      %v1772 = vadd.f32 %v1703, %v1771
      %v1773 = vpop.f32.mrb[0].mxu0
      %v1774 = vpop.f32.mrb[0].mxu0
      %v1775 = vadd.f32 %v1703, %v1774
      %v1776 = vpop.f32.mrb[0].mxu0
      %1777 = vmatprep.mubr.bf16.mxu0 0
      %1778 = vmatmul.mubr.bf16.gmra.mrb[0].mxu0 %v1725
      %v1779 = vpop.f32.mrb[0].mxu0
      %v1780 = vadd.f32 %v1703, %v1779
      %v1781 = vpop.f32.mrb[0].mxu0
      %v1782 = vpop.f32.mrb[0].mxu0
      %v1783 = vadd.f32 %v1703, %v1782
      %v1784 = vpop.f32.mrb[0].mxu0
      %1785 = vmatprep.mubr.bf16.mxu0 0
      %1786 = vmatmul.mubr.bf16.gmra.mrb[0].mxu0 %v1728
      %v1787 = vpop.f32.mrb[0].mxu0
      %v1788 = vadd.f32 %v1703, %v1787
      %v1789 = vpop.f32.mrb[0].mxu0
      %v1790 = vpop.f32.mrb[0].mxu0
      %v1791 = vadd.f32 %v1703, %v1790
      %v1792 = vpop.f32.mrb[0].mxu0
      %1793 = vmatprep.mubr.bf16.mxu0 0
      %1794 = vmatmul.mubr.bf16.gmra.mrb[0].mxu0 %v1731
      %v1795 = vpop.f32.mrb[0].mxu0
      %v1796 = vadd.f32 %v1703, %v1795
      %v1797 = vpop.f32.mrb[0].mxu0
      %v1798 = vpop.f32.mrb[0].mxu0
      %v1799 = vadd.f32 %v1703, %v1798
      %v1800 = vpop.f32.mrb[0].mxu0
      %1801 = vdwg.mxu0
      %v1802 = vmax.f32 %v1772, 0.0
      %v1803 = vmax.f32 %v1775, 0.0
      %v1804 = vmax.f32 %v1780, 0.0
      %v1805 = vmax.f32 %v1783, 0.0
      %v1806 = vmax.f32 %v1788, 0.0
      %v1807 = vmax.f32 %v1791, 0.0
      %v1808 = vmax.f32 %v1796, 0.0
      %v1809 = vmax.f32 %v1799, 0.0
      %s1810 = scalar_lea.vmem [#allocation3], 16
      %1811 = vst.msk [vmem:[%s1810 + $0x1] sm:$0xff] %vm252, %v1802
      %1812 = vst.msk [vmem:[%s1810 + $0x11] sm:$0xff] %vm252, %v1803
      %1813 = vst.msk [vmem:[%s1810 + $0x21] sm:$0xff] %vm252, %v1804
      %1814 = vst.msk [vmem:[%s1810 + $0x31] sm:$0xff] %vm252, %v1805
      %1815 = vst.msk [vmem:[%s1810 + $0x41] sm:$0xff] %vm252, %v1806
      %1816 = vst.msk [vmem:[%s1810 + $0x51] sm:$0xff] %vm252, %v1807
      %1817 = vst.msk [vmem:[%s1810 + $0x61] sm:$0xff] %vm252, %v1808
      %1818 = vst.msk [vmem:[%s1810 + $0x71] sm:$0xff] %vm252, %v1809
      %v1819 = vld [vmem:[#allocation3] sm:$0xff]
      %v1820 = vld [vmem:[#allocation3 + $0x8] sm:$0x3]
      %v1821 = vld [vmem:[#allocation3 + $0x10] sm:$0xff]
      %v1822 = vld [vmem:[#allocation3 + $0x18] sm:$0x3]
      %v1823 = vld [vmem:[#allocation3 + $0x20] sm:$0xff]
      %v1824 = vld [vmem:[#allocation3 + $0x28] sm:$0x3]
      %v1825 = vld [vmem:[#allocation3 + $0x30] sm:$0xff]
      %v1826 = vld [vmem:[#allocation3 + $0x38] sm:$0x3]
      %v1827 = vld [vmem:[#allocation3 + $0x40] sm:$0xff]
      %v1828 = vld [vmem:[#allocation3 + $0x48] sm:$0x3]
      %v1829 = vld [vmem:[#allocation3 + $0x50] sm:$0xff]
      %v1830 = vld [vmem:[#allocation3 + $0x58] sm:$0x3]
      %v1831 = vld [vmem:[#allocation3 + $0x60] sm:$0xff]
      %v1832 = vld [vmem:[#allocation3 + $0x68] sm:$0x3]
      %v1833 = vld [vmem:[#allocation3 + $0x70] sm:$0xff]
      %v1834 = vld [vmem:[#allocation3 + $0x78] sm:$0x3]
      %v1835 = vld [vmem:[%s1810] sm:$0xff]
      %v1836 = vld [vmem:[%s1810 + $0x8] sm:$0x3]
      %v1837 = vld [vmem:[%s1810 + $0x10] sm:$0xff]
      %v1838 = vld [vmem:[%s1810 + $0x18] sm:$0x3]
      %v1839 = vld [vmem:[%s1810 + $0x20] sm:$0xff]
      %v1840 = vld [vmem:[%s1810 + $0x28] sm:$0x3]
      %v1841 = vld [vmem:[%s1810 + $0x30] sm:$0xff]
      %v1842 = vld [vmem:[%s1810 + $0x38] sm:$0x3]
      %v1843 = vld [vmem:[%s1810 + $0x40] sm:$0xff]
      %v1844 = vld [vmem:[%s1810 + $0x48] sm:$0x3]
      %v1845 = vld [vmem:[%s1810 + $0x50] sm:$0xff]
      %v1846 = vld [vmem:[%s1810 + $0x58] sm:$0x3]
      %v1847 = vld [vmem:[%s1810 + $0x60] sm:$0xff]
      %v1848 = vld [vmem:[%s1810 + $0x68] sm:$0x3]
      %v1849 = vld [vmem:[%s1810 + $0x70] sm:$0xff]
      %v1850 = vld [vmem:[%s1810 + $0x78] sm:$0x3]
      %s1851 = scalar_lea.vmem [#allocation3], 32
      %v1852 = vld [vmem:[%s1851] sm:$0xff]
      %v1853 = vld [vmem:[%s1851 + $0x8] sm:$0x3]
      %v1854 = vld [vmem:[%s1851 + $0x10] sm:$0xff]
      %v1855 = vld [vmem:[%s1851 + $0x18] sm:$0x3]
      %v1856 = vld [vmem:[%s1851 + $0x20] sm:$0xff]
      %v1857 = vld [vmem:[%s1851 + $0x28] sm:$0x3]
      %v1858 = vld [vmem:[%s1851 + $0x30] sm:$0xff]
      %v1859 = vld [vmem:[%s1851 + $0x38] sm:$0x3]
      %v1860 = vld [vmem:[%s1851 + $0x40] sm:$0xff]
      %v1861 = vld [vmem:[%s1851 + $0x48] sm:$0x3]
      %v1862 = vld [vmem:[%s1851 + $0x50] sm:$0xff]
      %v1863 = vld [vmem:[%s1851 + $0x58] sm:$0x3]
      %v1864 = vld [vmem:[%s1851 + $0x60] sm:$0xff]
      %v1865 = vld [vmem:[%s1851 + $0x68] sm:$0x3]
      %v1866 = vld [vmem:[%s1851 + $0x70] sm:$0xff]
      %v1867 = vld [vmem:[%s1851 + $0x78] sm:$0x3]
      %v1884 = vrot.slane %v1819, 1
      %v1885 = vrot.slane %v1820, 1
      %v1886 = vsel %vm1249, %v1884, %v1885
      %v1887 = vrot.slane %v1821, 1
      %v1888 = vrot.slane %v1822, 1
      %v1889 = vsel %vm1249, %v1887, %v1888
      %v1890 = vrot.slane %v1823, 1
      %v1891 = vrot.slane %v1824, 1
      %v1892 = vsel %vm1249, %v1890, %v1891
      %v1893 = vrot.slane %v1825, 1
      %v1894 = vrot.slane %v1826, 1
      %v1895 = vsel %vm1249, %v1893, %v1894
      %v1896 = vrot.slane %v1827, 1
      %v1897 = vrot.slane %v1828, 1
      %v1898 = vsel %vm1249, %v1896, %v1897
      %v1899 = vrot.slane %v1829, 1
      %v1900 = vrot.slane %v1830, 1
      %v1901 = vsel %vm1249, %v1899, %v1900
      %v1902 = vrot.slane %v1831, 1
      %v1903 = vrot.slane %v1832, 1
      %v1904 = vsel %vm1249, %v1902, %v1903
      %v1905 = vrot.slane %v1833, 1
      %v1906 = vrot.slane %v1834, 1
      %v1907 = vsel %vm1249, %v1905, %v1906
      %1908 = vrot.lane.b32.xlu0 %v1886, 8
      %v1909 = vpop.permute.xlu0 %1908
      %1910 = vrot.lane.b32.xlu0 %v1889, 8
      %v1911 = vpop.permute.xlu0 %1910
      %1912 = vrot.lane.b32.xlu0 %v1892, 8
      %v1913 = vpop.permute.xlu0 %1912
      %1914 = vrot.lane.b32.xlu0 %v1895, 8
      %v1915 = vpop.permute.xlu0 %1914
      %1916 = vrot.lane.b32.xlu0 %v1898, 8
      %v1917 = vpop.permute.xlu0 %1916
      %1918 = vrot.lane.b32.xlu0 %v1901, 8
      %v1919 = vpop.permute.xlu0 %1918
      %1920 = vrot.lane.b32.xlu0 %v1904, 8
      %v1921 = vpop.permute.xlu0 %1920
      %1922 = vrot.lane.b32.xlu0 %v1907, 8
      %v1923 = vpop.permute.xlu0 %1922
      %v1932 = vrot.slane %v1819, 2
      %v1933 = vrot.slane %v1820, 2
      %v1934 = vsel %vm1298, %v1932, %v1933
      %v1935 = vrot.slane %v1821, 2
      %v1936 = vrot.slane %v1822, 2
      %v1937 = vsel %vm1298, %v1935, %v1936
      %v1938 = vrot.slane %v1823, 2
      %v1939 = vrot.slane %v1824, 2
      %v1940 = vsel %vm1298, %v1938, %v1939
      %v1941 = vrot.slane %v1825, 2
      %v1942 = vrot.slane %v1826, 2
      %v1943 = vsel %vm1298, %v1941, %v1942
      %v1944 = vrot.slane %v1827, 2
      %v1945 = vrot.slane %v1828, 2
      %v1946 = vsel %vm1298, %v1944, %v1945
      %v1947 = vrot.slane %v1829, 2
      %v1948 = vrot.slane %v1830, 2
      %v1949 = vsel %vm1298, %v1947, %v1948
      %v1950 = vrot.slane %v1831, 2
      %v1951 = vrot.slane %v1832, 2
      %v1952 = vsel %vm1298, %v1950, %v1951
      %v1953 = vrot.slane %v1833, 2
      %v1954 = vrot.slane %v1834, 2
      %v1955 = vsel %vm1298, %v1953, %v1954
      %1956 = vrot.lane.b32.xlu0 %v1934, 16
      %v1957 = vpop.permute.xlu0 %1956
      %1958 = vrot.lane.b32.xlu0 %v1937, 16
      %v1959 = vpop.permute.xlu0 %1958
      %1960 = vrot.lane.b32.xlu0 %v1940, 16
      %v1961 = vpop.permute.xlu0 %1960
      %1962 = vrot.lane.b32.xlu0 %v1943, 16
      %v1963 = vpop.permute.xlu0 %1962
      %1964 = vrot.lane.b32.xlu0 %v1946, 16
      %v1965 = vpop.permute.xlu0 %1964
      %1966 = vrot.lane.b32.xlu0 %v1949, 16
      %v1967 = vpop.permute.xlu0 %1966
      %1968 = vrot.lane.b32.xlu0 %v1952, 16
      %v1969 = vpop.permute.xlu0 %1968
      %1970 = vrot.lane.b32.xlu0 %v1955, 16
      %v1971 = vpop.permute.xlu0 %1970
      %1988 = vrot.lane.b32.xlu0 %v1835, 24
      %v1989 = vpop.permute.xlu0 %1988
      %1990 = vrot.lane.b32.xlu0 %v1837, 24
      %v1991 = vpop.permute.xlu0 %1990
      %1992 = vrot.lane.b32.xlu0 %v1839, 24
      %v1993 = vpop.permute.xlu0 %1992
      %1994 = vrot.lane.b32.xlu0 %v1841, 24
      %v1995 = vpop.permute.xlu0 %1994
      %1996 = vrot.lane.b32.xlu0 %v1843, 24
      %v1997 = vpop.permute.xlu0 %1996
      %1998 = vrot.lane.b32.xlu0 %v1845, 24
      %v1999 = vpop.permute.xlu0 %1998
      %2000 = vrot.lane.b32.xlu0 %v1847, 24
      %v2001 = vpop.permute.xlu0 %2000
      %2002 = vrot.lane.b32.xlu0 %v1849, 24
      %v2003 = vpop.permute.xlu0 %2002
      %v2020 = vrot.slane %v1835, 1
      %v2021 = vrot.slane %v1836, 1
      %v2022 = vsel %vm1249, %v2020, %v2021
      %v2023 = vrot.slane %v1837, 1
      %v2024 = vrot.slane %v1838, 1
      %v2025 = vsel %vm1249, %v2023, %v2024
      %v2026 = vrot.slane %v1839, 1
      %v2027 = vrot.slane %v1840, 1
      %v2028 = vsel %vm1249, %v2026, %v2027
      %v2029 = vrot.slane %v1841, 1
      %v2030 = vrot.slane %v1842, 1
      %v2031 = vsel %vm1249, %v2029, %v2030
      %v2032 = vrot.slane %v1843, 1
      %v2033 = vrot.slane %v1844, 1
      %v2034 = vsel %vm1249, %v2032, %v2033
      %v2035 = vrot.slane %v1845, 1
      %v2036 = vrot.slane %v1846, 1
      %v2037 = vsel %vm1249, %v2035, %v2036
      %v2038 = vrot.slane %v1847, 1
      %v2039 = vrot.slane %v1848, 1
      %v2040 = vsel %vm1249, %v2038, %v2039
      %v2041 = vrot.slane %v1849, 1
      %v2042 = vrot.slane %v1850, 1
      %v2043 = vsel %vm1249, %v2041, %v2042
      %2044 = vrot.lane.b32.xlu0 %v2022, 32
      %v2045 = vpop.permute.xlu0 %2044
      %2046 = vrot.lane.b32.xlu0 %v2025, 32
      %v2047 = vpop.permute.xlu0 %2046
      %2048 = vrot.lane.b32.xlu0 %v2028, 32
      %v2049 = vpop.permute.xlu0 %2048
      %2050 = vrot.lane.b32.xlu0 %v2031, 32
      %v2051 = vpop.permute.xlu0 %2050
      %2052 = vrot.lane.b32.xlu0 %v2034, 32
      %v2053 = vpop.permute.xlu0 %2052
      %2054 = vrot.lane.b32.xlu0 %v2037, 32
      %v2055 = vpop.permute.xlu0 %2054
      %2056 = vrot.lane.b32.xlu0 %v2040, 32
      %v2057 = vpop.permute.xlu0 %2056
      %2058 = vrot.lane.b32.xlu0 %v2043, 32
      %v2059 = vpop.permute.xlu0 %2058
      %v2068 = vrot.slane %v1835, 2
      %v2069 = vrot.slane %v1836, 2
      %v2070 = vsel %vm1298, %v2068, %v2069
      %v2071 = vrot.slane %v1837, 2
      %v2072 = vrot.slane %v1838, 2
      %v2073 = vsel %vm1298, %v2071, %v2072
      %v2074 = vrot.slane %v1839, 2
      %v2075 = vrot.slane %v1840, 2
      %v2076 = vsel %vm1298, %v2074, %v2075
      %v2077 = vrot.slane %v1841, 2
      %v2078 = vrot.slane %v1842, 2
      %v2079 = vsel %vm1298, %v2077, %v2078
      %v2080 = vrot.slane %v1843, 2
      %v2081 = vrot.slane %v1844, 2
      %v2082 = vsel %vm1298, %v2080, %v2081
      %v2083 = vrot.slane %v1845, 2
      %v2084 = vrot.slane %v1846, 2
      %v2085 = vsel %vm1298, %v2083, %v2084
      %v2086 = vrot.slane %v1847, 2
      %v2087 = vrot.slane %v1848, 2
      %v2088 = vsel %vm1298, %v2086, %v2087
      %v2089 = vrot.slane %v1849, 2
      %v2090 = vrot.slane %v1850, 2
      %v2091 = vsel %vm1298, %v2089, %v2090
      %2092 = vrot.lane.b32.xlu0 %v2070, 40
      %v2093 = vpop.permute.xlu0 %2092
      %2094 = vrot.lane.b32.xlu0 %v2073, 40
      %v2095 = vpop.permute.xlu0 %2094
      %2096 = vrot.lane.b32.xlu0 %v2076, 40
      %v2097 = vpop.permute.xlu0 %2096
      %2098 = vrot.lane.b32.xlu0 %v2079, 40
      %v2099 = vpop.permute.xlu0 %2098
      %2100 = vrot.lane.b32.xlu0 %v2082, 40
      %v2101 = vpop.permute.xlu0 %2100
      %2102 = vrot.lane.b32.xlu0 %v2085, 40
      %v2103 = vpop.permute.xlu0 %2102
      %2104 = vrot.lane.b32.xlu0 %v2088, 40
      %v2105 = vpop.permute.xlu0 %2104
      %2106 = vrot.lane.b32.xlu0 %v2091, 40
      %v2107 = vpop.permute.xlu0 %2106
      %2124 = vrot.lane.b32.xlu0 %v1852, 48
      %v2125 = vpop.permute.xlu0 %2124
      %2126 = vrot.lane.b32.xlu0 %v1854, 48
      %v2127 = vpop.permute.xlu0 %2126
      %2128 = vrot.lane.b32.xlu0 %v1856, 48
      %v2129 = vpop.permute.xlu0 %2128
      %2130 = vrot.lane.b32.xlu0 %v1858, 48
      %v2131 = vpop.permute.xlu0 %2130
      %2132 = vrot.lane.b32.xlu0 %v1860, 48
      %v2133 = vpop.permute.xlu0 %2132
      %2134 = vrot.lane.b32.xlu0 %v1862, 48
      %v2135 = vpop.permute.xlu0 %2134
      %2136 = vrot.lane.b32.xlu0 %v1864, 48
      %v2137 = vpop.permute.xlu0 %2136
      %2138 = vrot.lane.b32.xlu0 %v1866, 48
      %v2139 = vpop.permute.xlu0 %2138
      %v2156 = vrot.slane %v1852, 1
      %v2157 = vrot.slane %v1853, 1
      %v2158 = vsel %vm1249, %v2156, %v2157
      %v2159 = vrot.slane %v1854, 1
      %v2160 = vrot.slane %v1855, 1
      %v2161 = vsel %vm1249, %v2159, %v2160
      %v2162 = vrot.slane %v1856, 1
      %v2163 = vrot.slane %v1857, 1
      %v2164 = vsel %vm1249, %v2162, %v2163
      %v2165 = vrot.slane %v1858, 1
      %v2166 = vrot.slane %v1859, 1
      %v2167 = vsel %vm1249, %v2165, %v2166
      %v2168 = vrot.slane %v1860, 1
      %v2169 = vrot.slane %v1861, 1
      %v2170 = vsel %vm1249, %v2168, %v2169
      %v2171 = vrot.slane %v1862, 1
      %v2172 = vrot.slane %v1863, 1
      %v2173 = vsel %vm1249, %v2171, %v2172
      %v2174 = vrot.slane %v1864, 1
      %v2175 = vrot.slane %v1865, 1
      %v2176 = vsel %vm1249, %v2174, %v2175
      %v2177 = vrot.slane %v1866, 1
      %v2178 = vrot.slane %v1867, 1
      %v2179 = vsel %vm1249, %v2177, %v2178
      %2180 = vrot.lane.b32.xlu0 %v2158, 56
      %v2181 = vpop.permute.xlu0 %2180
      %2182 = vrot.lane.b32.xlu0 %v2161, 56
      %v2183 = vpop.permute.xlu0 %2182
      %2184 = vrot.lane.b32.xlu0 %v2164, 56
      %v2185 = vpop.permute.xlu0 %2184
      %2186 = vrot.lane.b32.xlu0 %v2167, 56
      %v2187 = vpop.permute.xlu0 %2186
      %2188 = vrot.lane.b32.xlu0 %v2170, 56
      %v2189 = vpop.permute.xlu0 %2188
      %2190 = vrot.lane.b32.xlu0 %v2173, 56
      %v2191 = vpop.permute.xlu0 %2190
      %2192 = vrot.lane.b32.xlu0 %v2176, 56
      %v2193 = vpop.permute.xlu0 %2192
      %2194 = vrot.lane.b32.xlu0 %v2179, 56
      %v2195 = vpop.permute.xlu0 %2194
      %v2204 = vrot.slane %v1852, 2
      %v2205 = vrot.slane %v1853, 2
      %v2206 = vsel %vm1298, %v2204, %v2205
      %v2207 = vrot.slane %v1854, 2
      %v2208 = vrot.slane %v1855, 2
      %v2209 = vsel %vm1298, %v2207, %v2208
      %v2210 = vrot.slane %v1856, 2
      %v2211 = vrot.slane %v1857, 2
      %v2212 = vsel %vm1298, %v2210, %v2211
      %v2213 = vrot.slane %v1858, 2
      %v2214 = vrot.slane %v1859, 2
      %v2215 = vsel %vm1298, %v2213, %v2214
      %v2216 = vrot.slane %v1860, 2
      %v2217 = vrot.slane %v1861, 2
      %v2218 = vsel %vm1298, %v2216, %v2217
      %v2219 = vrot.slane %v1862, 2
      %v2220 = vrot.slane %v1863, 2
      %v2221 = vsel %vm1298, %v2219, %v2220
      %v2222 = vrot.slane %v1864, 2
      %v2223 = vrot.slane %v1865, 2
      %v2224 = vsel %vm1298, %v2222, %v2223
      %v2225 = vrot.slane %v1866, 2
      %v2226 = vrot.slane %v1867, 2
      %v2227 = vsel %vm1298, %v2225, %v2226
      %2228 = vrot.lane.b32.xlu0 %v2206, 64
      %v2229 = vpop.permute.xlu0 %2228
      %2230 = vrot.lane.b32.xlu0 %v2209, 64
      %v2231 = vpop.permute.xlu0 %2230
      %2232 = vrot.lane.b32.xlu0 %v2212, 64
      %v2233 = vpop.permute.xlu0 %2232
      %2234 = vrot.lane.b32.xlu0 %v2215, 64
      %v2235 = vpop.permute.xlu0 %2234
      %2236 = vrot.lane.b32.xlu0 %v2218, 64
      %v2237 = vpop.permute.xlu0 %2236
      %2238 = vrot.lane.b32.xlu0 %v2221, 64
      %v2239 = vpop.permute.xlu0 %2238
      %2240 = vrot.lane.b32.xlu0 %v2224, 64
      %v2241 = vpop.permute.xlu0 %2240
      %2242 = vrot.lane.b32.xlu0 %v2227, 64
      %v2243 = vpop.permute.xlu0 %2242
      %v2252 = vsel %vm252, %v1819, %v1909
      %v2253 = vsel %vm252, %v1821, %v1911
      %v2254 = vsel %vm252, %v1823, %v1913
      %v2255 = vsel %vm252, %v1825, %v1915
      %v2256 = vsel %vm252, %v1827, %v1917
      %v2257 = vsel %vm252, %v1829, %v1919
      %v2258 = vsel %vm252, %v1831, %v1921
      %v2259 = vsel %vm252, %v1833, %v1923
      %v2260 = vsel %vm1644, %v2252, %v1957
      %v2261 = vsel %vm1644, %v2253, %v1959
      %v2262 = vsel %vm1644, %v2254, %v1961
      %v2263 = vsel %vm1644, %v2255, %v1963
      %v2264 = vsel %vm1644, %v2256, %v1965
      %v2265 = vsel %vm1644, %v2257, %v1967
      %v2266 = vsel %vm1644, %v2258, %v1969
      %v2267 = vsel %vm1644, %v2259, %v1971
      %v2268 = vsel %vm1662, %v2260, %v1989
      %v2269 = vsel %vm1662, %v2261, %v1991
      %v2270 = vsel %vm1662, %v2262, %v1993
      %v2271 = vsel %vm1662, %v2263, %v1995
      %v2272 = vsel %vm1662, %v2264, %v1997
      %v2273 = vsel %vm1662, %v2265, %v1999
      %v2274 = vsel %vm1662, %v2266, %v2001
      %v2275 = vsel %vm1662, %v2267, %v2003
      %v2276 = vsel %vm1680, %v2268, %v2045
      %v2277 = vsel %vm1680, %v2269, %v2047
      %v2278 = vsel %vm1680, %v2270, %v2049
      %v2279 = vsel %vm1680, %v2271, %v2051
      %v2280 = vsel %vm1680, %v2272, %v2053
      %v2281 = vsel %vm1680, %v2273, %v2055
      %v2282 = vsel %vm1680, %v2274, %v2057
      %v2283 = vsel %vm1680, %v2275, %v2059
      %vm2284 = vcmask 326656
      %v2285 = vsel %vm2284, %v2276, %v2093
      %v2286 = vsel %vm2284, %v2277, %v2095
      %v2287 = vsel %vm2284, %v2278, %v2097
      %v2288 = vsel %vm2284, %v2279, %v2099
      %v2289 = vsel %vm2284, %v2280, %v2101
      %v2290 = vsel %vm2284, %v2281, %v2103
      %v2291 = vsel %vm2284, %v2282, %v2105
      %v2292 = vsel %vm2284, %v2283, %v2107
      %vm2293 = vcmask 392192
      %v2294 = vsel %vm2293, %v2285, %v2125
      %v2295 = vsel %vm2293, %v2286, %v2127
      %v2296 = vsel %vm2293, %v2287, %v2129
      %v2297 = vsel %vm2293, %v2288, %v2131
      %v2298 = vsel %vm2293, %v2289, %v2133
      %v2299 = vsel %vm2293, %v2290, %v2135
      %v2300 = vsel %vm2293, %v2291, %v2137
      %v2301 = vsel %vm2293, %v2292, %v2139
      %vm2302 = vcmask 457728
      %v2303 = vsel %vm2302, %v2294, %v2181
      %v2304 = vsel %vm2302, %v2295, %v2183
      %v2305 = vsel %vm2302, %v2296, %v2185
      %v2306 = vsel %vm2302, %v2297, %v2187
      %v2307 = vsel %vm2302, %v2298, %v2189
      %v2308 = vsel %vm2302, %v2299, %v2191
      %v2309 = vsel %vm2302, %v2300, %v2193
      %v2310 = vsel %vm2302, %v2301, %v2195
      %vm2311 = vcmask 523264
      %v2312 = vsel %vm2311, %v2303, %v2229
      %v2313 = vsel %vm2311, %v2304, %v2231
      %v2314 = vsel %vm2311, %v2305, %v2233
      %v2315 = vsel %vm2311, %v2306, %v2235
      %v2316 = vsel %vm2311, %v2307, %v2237
      %v2317 = vsel %vm2311, %v2308, %v2239
      %v2318 = vsel %vm2311, %v2309, %v2241
      %v2319 = vsel %vm2311, %v2310, %v2243
      %v2320 = vpack.c.bf16 %v2313, %v2312
      %v2321 = vpack.c.bf16 %v2315, %v2314
      %v2322 = vpack.c.bf16 %v2317, %v2316
      %v2323 = vpack.c.bf16 %v2319, %v2318
      %v2324 = vld [vmem:[%s3] sm:$0xf]
      %v2325 = vld [vmem:[%s3 + $0x4] sm:$0xf]
      %v2326 = vld [vmem:[%s3 + $0x8] sm:$0xf]
      %v2327 = vld [vmem:[%s3 + $0xc] sm:$0xf]
      %v2328 = vld [vmem:[%s3 + $0x10] sm:$0xf]
      %v2329 = vld [vmem:[%s3 + $0x14] sm:$0xf]
      %v2330 = vld [vmem:[%s3 + $0x18] sm:$0xf]
      %v2331 = vld [vmem:[%s3 + $0x1c] sm:$0xf]
      %v2332 = vld [vmem:[%s3 + $0x20] sm:$0xf]
      %v2333 = vld [vmem:[%s4] sm:$0x1]
      %v2335 = vlaneseq
      %v2336 = vshrl.u32 %v2335, 7
      %v2337 = vsub.s32 0, %v2336
      %v2338 = vrot.slane %v2333, %v2337
      %v2349 = vunpack.c.l.b16 %v2324
      %v2350 = vunpack.c.l.b16 %v2325
      %v2351 = vunpack.c.l.b16 %v2326
      %v2352 = vunpack.c.l.b16 %v2327
      %v2353 = vunpack.c.l.b16 %v2328
      %v2354 = vunpack.c.l.b16 %v2329
      %v2355 = vunpack.c.l.b16 %v2330
      %v2356 = vunpack.c.l.b16 %v2331
      %v2357 = vunpack.c.l.b16 %v2332
      %v2358 = vpack.c.b16 %v2350, %v2349
      %v2359 = vpack.c.b16 %v2352, %v2351
      %v2360 = vpack.c.b16 %v2354, %v2353
      %v2361 = vpack.c.b16 %v2356, %v2355
      %v2362 = vpack.c.b16 %v2357, %v2357
      %vm2367 = vcmask 588800
      %v2369 = vsel %vm2367, %v2320, 0
      %v2372 = vsel %vm2367, %v2321, 0
      %v2375 = vsel %vm2367, %v2322, 0
      %v2378 = vsel %vm2367, %v2323, 0
      %vm2380 = vcmask 1043456
      %v2382 = vsel %vm2380, %v2362, 0
      %2384 = vmatprep.subr.bf16.mxu0 0
      %2385 = vmatpush1.bf16.msra.mxu0 %v2358
      %2386 = vmatprep.subr.bf16.mxu0 0
      %2387 = vmatpush1.bf16.msra.mxu0 %v2359
      %2388 = vmatprep.subr.bf16.mxu0 0
      %2389 = vmatpush1.bf16.msra.mxu0 %v2360
      %2390 = vmatprep.subr.bf16.mxu0 0
      %2391 = vmatpush1.bf16.msra.mxu0 %v2361
      %2392 = vmatprep.subr.bf16.mxu0 0
      %2393 = vmatpush1.bf16.msra.mxu0 %v2382
      %2394 = vmatprep.subr.bf16.mxu0 0
      %2395 = vmatpush1.bf16.msra.mxu0 0
      %2396 = vmatprep.subr.bf16.mxu0 0
      %2397 = vmatpush1.bf16.msra.mxu0 0
      %2398 = vmatprep.subr.bf16.mxu0 0
      %2399 = vmatpush1.bf16.msra.mxu0 0
      %2400 = vmatprep.subr.bf16.mxu0 0
      %2401 = vmatpush1.bf16.msra.mxu0 0
      %2402 = vmatprep.subr.bf16.mxu0 0
      %2403 = vmatpush1.bf16.msra.mxu0 0
      %2404 = vmatprep.subr.bf16.mxu0 0
      %2405 = vmatpush1.bf16.msra.mxu0 0
      %2406 = vmatprep.subr.bf16.mxu0 0
      %2407 = vmatpush1.bf16.msra.mxu0 0
      %2408 = vmatprep.subr.bf16.mxu0 0
      %2409 = vmatpush1.bf16.msra.mxu0 0
      %2410 = vmatprep.subr.bf16.mxu0 0
      %2411 = vmatpush1.bf16.msra.mxu0 0
      %2412 = vmatprep.subr.bf16.mxu0 0
      %2413 = vmatpush1.bf16.msra.mxu0 0
      %2414 = vmatprep.subr.bf16.mxu0 0
      %2415 = vmatpush1.bf16.msra.mxu0 0
      %2416 = vmatprep.mubr.bf16.mxu0 0
      %2417 = vmatmul.mubr.bf16.gmra.mrb[0].mxu0 %v2369
      %v2418 = vpop.f32.mrb[0].mxu0
      %v2419 = vadd.f32 %v2338, %v2418
      %v2420 = vpop.f32.mrb[0].mxu0
      %v2421 = vpop.f32.mrb[0].mxu0
      %v2422 = vadd.f32 %v2338, %v2421
      %v2423 = vpop.f32.mrb[0].mxu0
      %2424 = vmatprep.mubr.bf16.mxu0 0
      %2425 = vmatmul.mubr.bf16.gmra.mrb[0].mxu0 %v2372
      %v2426 = vpop.f32.mrb[0].mxu0
      %v2427 = vadd.f32 %v2338, %v2426
      %v2428 = vpop.f32.mrb[0].mxu0
      %v2429 = vpop.f32.mrb[0].mxu0
      %v2430 = vadd.f32 %v2338, %v2429
      %v2431 = vpop.f32.mrb[0].mxu0
      %2432 = vmatprep.mubr.bf16.mxu0 0
      %2433 = vmatmul.mubr.bf16.gmra.mrb[0].mxu0 %v2375
      %v2434 = vpop.f32.mrb[0].mxu0
      %v2435 = vadd.f32 %v2338, %v2434
      %v2436 = vpop.f32.mrb[0].mxu0
      %v2437 = vpop.f32.mrb[0].mxu0
      %v2438 = vadd.f32 %v2338, %v2437
      %v2439 = vpop.f32.mrb[0].mxu0
      %2440 = vmatprep.mubr.bf16.mxu0 0
      %2441 = vmatmul.mubr.bf16.gmra.mrb[0].mxu0 %v2378
      %v2442 = vpop.f32.mrb[0].mxu0
      %v2443 = vadd.f32 %v2338, %v2442
      %v2444 = vpop.f32.mrb[0].mxu0
      %v2445 = vpop.f32.mrb[0].mxu0
      %v2446 = vadd.f32 %v2338, %v2445
      %v2447 = vpop.f32.mrb[0].mxu0
      %2448 = vdwg.mxu0
      %v2449 = vmax.f32 %v2419, 0.0
      %v2450 = vmax.f32 %v2422, 0.0
      %v2451 = vmax.f32 %v2427, 0.0
      %v2452 = vmax.f32 %v2430, 0.0
      %v2453 = vmax.f32 %v2435, 0.0
      %v2454 = vmax.f32 %v2438, 0.0
      %v2455 = vmax.f32 %v2443, 0.0
      %v2456 = vmax.f32 %v2446, 0.0
      %v2465 = vrot.slane %v2450, 7
      %v2466 = vsel %vm1049, %v2465, %v2449
      %v2467 = vrot.slane %v2451, 6
      %v2468 = vsel %vm1052, %v2467, %v2466
      %v2469 = vrot.slane %v2452, 5
      %v2470 = vsel %vm1055, %v2469, %v2468
      %v2471 = vrot.slane %v2453, 4
      %v2472 = vsel %vm1058, %v2471, %v2470
      %v2473 = vrot.slane %v2454, 3
      %v2474 = vsel %vm1061, %v2473, %v2472
      %v2475 = vrot.slane %v2455, 2
      %v2476 = vsel %vm1064, %v2475, %v2474
      %v2477 = vrot.slane %v2456, 1
      %v2478 = vsel %vm1067, %v2477, %v2476
      %v2480 = vrot.slane %v2449, 1
      %v2481 = vsel %vm1049, %v2450, %v2480
      %v2482 = vrot.slane %v2451, 7
      %v2483 = vsel %vm1052, %v2482, %v2481
      %v2484 = vrot.slane %v2452, 6
      %v2485 = vsel %vm1055, %v2484, %v2483
      %v2486 = vrot.slane %v2453, 5
      %v2487 = vsel %vm1058, %v2486, %v2485
      %v2488 = vrot.slane %v2454, 4
      %v2489 = vsel %vm1061, %v2488, %v2487
      %v2490 = vrot.slane %v2455, 3
      %v2491 = vsel %vm1064, %v2490, %v2489
      %v2492 = vrot.slane %v2456, 2
      %v2493 = vsel %vm1067, %v2492, %v2491
      %2494 = vrot.lane.b32.xlu0 %v2493, 8
      %v2495 = vpop.permute.xlu0 %2494
      %v2497 = vrot.slane %v2449, 2
      %v2498 = vrot.slane %v2450, 1
      %v2499 = vsel %vm1049, %v2498, %v2497
      %v2500 = vsel %vm1052, %v2451, %v2499
      %v2501 = vrot.slane %v2452, 7
      %v2502 = vsel %vm1055, %v2501, %v2500
      %v2503 = vrot.slane %v2453, 6
      %v2504 = vsel %vm1058, %v2503, %v2502
      %v2505 = vrot.slane %v2454, 5
      %v2506 = vsel %vm1061, %v2505, %v2504
      %v2507 = vrot.slane %v2455, 4
      %v2508 = vsel %vm1064, %v2507, %v2506
      %v2509 = vrot.slane %v2456, 3
      %v2510 = vsel %vm1067, %v2509, %v2508
      %2511 = vrot.lane.b32.xlu0 %v2510, 16
      %v2512 = vpop.permute.xlu0 %2511
      %v2514 = vrot.slane %v2449, 3
      %v2515 = vrot.slane %v2450, 2
      %v2516 = vsel %vm1049, %v2515, %v2514
      %v2517 = vrot.slane %v2451, 1
      %v2518 = vsel %vm1052, %v2517, %v2516
      %v2519 = vsel %vm1055, %v2452, %v2518
      %v2520 = vrot.slane %v2453, 7
      %v2521 = vsel %vm1058, %v2520, %v2519
      %v2522 = vrot.slane %v2454, 6
      %v2523 = vsel %vm1061, %v2522, %v2521
      %v2524 = vrot.slane %v2455, 5
      %v2525 = vsel %vm1064, %v2524, %v2523
      %v2526 = vrot.slane %v2456, 4
      %v2527 = vsel %vm1067, %v2526, %v2525
      %2528 = vrot.lane.b32.xlu0 %v2527, 24
      %v2529 = vpop.permute.xlu0 %2528
      %v2531 = vrot.slane %v2449, 4
      %v2532 = vrot.slane %v2450, 3
      %v2533 = vsel %vm1049, %v2532, %v2531
      %v2534 = vrot.slane %v2451, 2
      %v2535 = vsel %vm1052, %v2534, %v2533
      %v2536 = vrot.slane %v2452, 1
      %v2537 = vsel %vm1055, %v2536, %v2535
      %v2538 = vsel %vm1058, %v2453, %v2537
      %v2539 = vrot.slane %v2454, 7
      %v2540 = vsel %vm1061, %v2539, %v2538
      %v2541 = vrot.slane %v2455, 6
      %v2542 = vsel %vm1064, %v2541, %v2540
      %v2543 = vrot.slane %v2456, 5
      %v2544 = vsel %vm1067, %v2543, %v2542
      %2545 = vrot.lane.b32.xlu0 %v2544, 32
      %v2546 = vpop.permute.xlu0 %2545
      %v2548 = vrot.slane %v2449, 5
      %v2549 = vrot.slane %v2450, 4
      %v2550 = vsel %vm1049, %v2549, %v2548
      %v2551 = vrot.slane %v2451, 3
      %v2552 = vsel %vm1052, %v2551, %v2550
      %v2553 = vrot.slane %v2452, 2
      %v2554 = vsel %vm1055, %v2553, %v2552
      %v2555 = vrot.slane %v2453, 1
      %v2556 = vsel %vm1058, %v2555, %v2554
      %v2557 = vsel %vm1061, %v2454, %v2556
      %v2558 = vrot.slane %v2455, 7
      %v2559 = vsel %vm1064, %v2558, %v2557
      %v2560 = vrot.slane %v2456, 6
      %v2561 = vsel %vm1067, %v2560, %v2559
      %2562 = vrot.lane.b32.xlu0 %v2561, 40
      %v2563 = vpop.permute.xlu0 %2562
      %v2565 = vrot.slane %v2449, 6
      %v2566 = vrot.slane %v2450, 5
      %v2567 = vsel %vm1049, %v2566, %v2565
      %v2568 = vrot.slane %v2451, 4
      %v2569 = vsel %vm1052, %v2568, %v2567
      %v2570 = vrot.slane %v2452, 3
      %v2571 = vsel %vm1055, %v2570, %v2569
      %v2572 = vrot.slane %v2453, 2
      %v2573 = vsel %vm1058, %v2572, %v2571
      %v2574 = vrot.slane %v2454, 1
      %v2575 = vsel %vm1061, %v2574, %v2573
      %v2576 = vsel %vm1064, %v2455, %v2575
      %v2577 = vrot.slane %v2456, 7
      %v2578 = vsel %vm1067, %v2577, %v2576
      %2579 = vrot.lane.b32.xlu0 %v2578, 48
      %v2580 = vpop.permute.xlu0 %2579
      %v2582 = vrot.slane %v2449, 7
      %v2583 = vrot.slane %v2450, 6
      %v2584 = vsel %vm1049, %v2583, %v2582
      %v2585 = vrot.slane %v2451, 5
      %v2586 = vsel %vm1052, %v2585, %v2584
      %v2587 = vrot.slane %v2452, 4
      %v2588 = vsel %vm1055, %v2587, %v2586
      %v2589 = vrot.slane %v2453, 3
      %v2590 = vsel %vm1058, %v2589, %v2588
      %v2591 = vrot.slane %v2454, 2
      %v2592 = vsel %vm1061, %v2591, %v2590
      %v2593 = vrot.slane %v2455, 1
      %v2594 = vsel %vm1064, %v2593, %v2592
      %v2595 = vsel %vm1067, %v2456, %v2594
      %2596 = vrot.lane.b32.xlu0 %v2595, 56
      %v2597 = vpop.permute.xlu0 %2596
      %v2599 = vsel %vm252, %v2478, %v2495
      %v2600 = vsel %vm1644, %v2599, %v2512
      %v2601 = vsel %vm1662, %v2600, %v2529
      %v2602 = vsel %vm1680, %v2601, %v2546
      %v2603 = vsel %vm2284, %v2602, %v2563
      %v2604 = vsel %vm2293, %v2603, %v2580
      %v2605 = vsel %vm2302, %v2604, %v2597
      %2606 = vst.msk [vmem:[%s222] sm:$0xff] %vm2311, %v2605
      %p2607 = scmp.lt.s32.totalorder %s16, 1
      %s2608 = scalar_select %p2607, %s16, 1
      %s2609 = smul.addr %s2608, 8
      %s2610 = scalar_lea.vmem %s5, %s2609
      // Predicated region
      $region41: #{encoder_block_v1_forward.1} parent=39 // pred_check
        %p2611 = pneg %p144
      $region42: #{encoder_block_v1_forward.1} parent=39 // pred_check_branch
        %2613 = sbr.rel (%p2611) target = $region44
      $region43: #{encoder_block_v1_forward.1} parent=39 // pred_region
        _
      $region44: #{encoder_block_v1_forward.1} parent=39 // pred_fallthru
        _
    $region40: #{encoder_block_v1_forward.1} parent=5 // pred_fallthru
      _
    %p2614 = scmp.le.s32.totalorder 2, %s11
    // Predicated region
    $region45: #{encoder_block_v1_forward.1} parent=5 // pred_check
      %p2615 = pneg %p2614
    $region46: #{encoder_block_v1_forward.1} parent=5 // pred_check_branch
      %2617 = sbr.rel (%p2615) target = $region48
    $region47: #{encoder_block_v1_forward.1} parent=5 // pred_region
      %s2618 = ssub.s32 %s11, 2
      // Predicated region
      $region49: #{encoder_block_v1_forward.1} parent=47 // pred_check
        %p2619 = pneg %p150
      $region50: #{encoder_block_v1_forward.1} parent=47 // pred_check_branch
        %2621 = sbr.rel (%p2619) target = $region52
      $region51: #{encoder_block_v1_forward.1} parent=47 // pred_region
        %p2622 = scmp.lt.s32.totalorder %s17, 1
        %s2623 = scalar_select %p2622, %s17, 1
        %s2624 = smul.addr %s2623, 8
        %s2625 = scalar_lea.vmem %s5, %s2624
      $region52: #{encoder_block_v1_forward.1} parent=47 // pred_fallthru
        _
    $region48: #{encoder_block_v1_forward.1} parent=5 // pred_fallthru
      _
  $region6: #{encoder_block_v1_forward.1} parent=0 // loop_footer
    %s15 = sadd.s32 1, %s11
  $region7: #{encoder_block_v1_forward.1} parent=0 // loop_footer_branch
    %10 = sbr.rel target = $region3
  $region8: #{encoder_block_v1_forward.1} parent=0 // loop_exit
    _

</llo_original>
